<compile_context>
chip_gen: v6e
topology: v6e:2x2x1
jax: 0.10.0
libtpu: 0.0.40
codegen_flags: <defaults>
</compile_context>

<pallas_src>
import functools

import jax
import jax.numpy as jnp
import numpy as np
from jax import lax
from jax.experimental import pallas as pl
from jax.experimental.pallas import tpu as pltpu

# ---- model dims (from the PyTorch module) ------------------------------------
HIDDEN = 8            # hidden_dim
NUM_EXPERTS = 4
NUM_CLASSES = HIDDEN  # CE over sentence_embed of width hidden_dim

# ---- small example shapes -----------------------------------------------------
BATCH = 2
SEQ = 16              # sequence length (multiple of SEQ_TILE)
SEQ_TILE = 8          # tokens per grid step (sublane-aligned)

# ---- lane padding --------------------------------------------------------------
HP = 128              # hidden padded to one full lane width
EP = 128              # gate-logit dim padded to one full lane width


def _top1_moe(h, wg, we, be, *, num_experts):
    """Top-1 (k=1) MoE on a lane-padded token tile.

    h: [T, HP], wg: [HP, EP] (cols >= num_experts are zero),
    we: [E, HP, HP], be: [E, HP].  Dense combine over the tiny static E;
    each token's expert output is gated by its argmax softmax probability
    (matches DeepSpeed top-1 gating / the PyTorch reference).
    """
    T, hp = h.shape
    logits = jnp.dot(h, wg, preferred_element_type=jnp.float32)        # [T, EP]
    eiota = lax.broadcasted_iota(jnp.int32, logits.shape, 1)
    logits = jnp.where(eiota < num_experts, logits, -jnp.inf)          # mask padded experts
    m = jnp.max(logits, axis=-1, keepdims=True)                        # [T, 1]
    p = jnp.exp(logits - m)                                            # padded lanes -> 0
    denom = jnp.sum(p, axis=-1, keepdims=True)                         # [T, 1]
    probs = p * pl.reciprocal(denom, approx=True)                      # EUP, off the VALU path
    # top-1 expert index with first-max tie break (matches torch.argmax)
    is_max = logits >= m
    e_idx = jnp.min(jnp.where(is_max, eiota, num_experts), axis=-1, keepdims=True)

    out = jnp.zeros((T, hp), jnp.float32)
    # TODO(synk): at real sizes (H >= 128, large N) replace this dense all-expert
    # combine with grouped top-1 dispatch (scalar-prefetched group offsets +
    # expert-indexed BlockSpec index_map) and stream expert weights from HBM with
    # double buffering (v7x 64 MiB VMEM budget).  At E=4, H(pad)=128 the dense
    # combine is one MXU pass per expert per tile.
    for e in range(num_experts):
        gate = (e_idx == e).astype(jnp.float32) * probs[:, e:e + 1]    # [T, 1]
        y_e = jnp.dot(h, we[e], preferred_element_type=jnp.float32) + be[e:e + 1, :]
        out = out + gate * y_e                                         # register accumulate
    return out
    # TODO(synk): DynamicMoE's capacity-based token dropping and aux
    # load-balancing loss are not modeled (the reference forward discards them).


def moe_forward_kernel(x_ref, w1_ref, b1_ref,
                       wg2_ref, we2_ref, be2_ref,
                       wg3_ref, we3_ref, be3_ref,
                       yoh_ref, loss_ref, sent_acc,
                       *, seq_len, num_experts, num_classes):
    s = pl.program_id(1)
    last = pl.num_programs(1) - 1

    @pl.when(s == 0)
    def _init():
        sent_acc[...] = jnp.zeros_like(sent_acc)

    # self.linear
    h = jnp.dot(x_ref[...], w1_ref[...], preferred_element_type=jnp.float32) + b1_ref[...]
    # self.linear2 / self.linear3 (DynamicMoE, k=1), fused per token tile
    o2 = _top1_moe(h, wg2_ref[...], we2_ref[...], be2_ref[...], num_experts=num_experts)
    o3 = _top1_moe(o2, wg3_ref[...], we3_ref[...], be3_ref[...], num_experts=num_experts)
    hsum = h + o3                                                      # [T, HP]
    # running sum for the sequence mean (replaces the pooling matmul)
    sent_acc[...] += jnp.sum(hsum, axis=0, keepdims=True)              # [1, HP]

    @pl.when(s == last)
    def _finalize():
        sent = sent_acc[...] * (1.0 / seq_len)                          # [1, HP]
        lane = lax.broadcasted_iota(jnp.int32, sent.shape, 1)
        sent_m = jnp.where(lane < num_classes, sent, -jnp.inf)          # mask padded classes
        mx = jnp.max(sent_m, axis=-1, keepdims=True)                    # [1, 1]
        lse = mx + jnp.log(jnp.sum(jnp.exp(sent_m - mx), axis=-1, keepdims=True))
        # one-hot labels are zero on padded lanes, so use the unmasked sent here
        tgt = jnp.sum(yoh_ref[0] * sent, axis=-1, keepdims=True)        # [1, 1]
        per = lse - tgt                                                 # CE for this batch row
        loss_ref[...] = jnp.broadcast_to(per.reshape(1, 1, 1), (1, 1, sent.shape[-1]))


def _pad2d(a, rows, cols):
    return jnp.zeros((rows, cols), jnp.float32).at[:a.shape[0], :a.shape[1]].set(a)


def _pad_experts(we, hp):
    e, hi, ho = we.shape
    return jnp.zeros((e, hp, hp), jnp.float32).at[:, :hi, :ho].set(we)


def simple_dynamic_moe_loss(x, y, params):
    """x: [B, S, H] f32, y: [B] int32 labels. Returns the scalar CE loss."""
    B, S, H = x.shape
    assert S % SEQ_TILE == 0
    s_tiles = S // SEQ_TILE

    # host-side zero padding to lane-dense (., 128) operands
    x_tok = jnp.zeros((B * S, HP), jnp.float32).at[:, :H].set(x.reshape(B * S, H))
    w1 = _pad2d(params["w1"], HP, HP)
    b1 = _pad2d(params["b1"], 1, HP)
    wg2 = _pad2d(params["wg2"], HP, EP)
    we2 = _pad_experts(params["we2"], HP)
    be2 = _pad2d(params["be2"], NUM_EXPERTS, HP)
    wg3 = _pad2d(params["wg3"], HP, EP)
    we3 = _pad_experts(params["we3"], HP)
    be3 = _pad2d(params["be3"], NUM_EXPERTS, HP)
    yoh = jax.nn.one_hot(y, HP, dtype=jnp.float32).reshape(B, 1, HP)   # labels < NUM_CLASSES

    def const(*blk):  # full-array block, resident across the whole grid
        return pl.BlockSpec(blk, lambda b, s: (0,) * len(blk))

    kernel = functools.partial(moe_forward_kernel, seq_len=S,
                               num_experts=NUM_EXPERTS, num_classes=NUM_CLASSES)

    per_batch = pl.pallas_call(
        kernel,
        out_shape=jax.ShapeDtypeStruct((B, 1, HP), jnp.float32),
        grid_spec=pltpu.PrefetchScalarGridSpec(
            num_scalar_prefetch=0,
            grid=(B, s_tiles),
            in_specs=[
                pl.BlockSpec((SEQ_TILE, HP), lambda b, s: (b * s_tiles + s, 0)),  # tokens
                const(HP, HP),                     # w1
                const(1, HP),                      # b1
                const(HP, EP),                     # wg2
                const(NUM_EXPERTS, HP, HP),        # we2
                const(NUM_EXPERTS, HP),            # be2
                const(HP, EP),                     # wg3
                const(NUM_EXPERTS, HP, HP),        # we3
                const(NUM_EXPERTS, HP),            # be3
                pl.BlockSpec((1, 1, HP), lambda b, s: (b, 0, 0)),                 # one-hot y
            ],
            out_specs=pl.BlockSpec((1, 1, HP), lambda b, s: (b, 0, 0)),
            scratch_shapes=[pltpu.VMEM((1, HP), jnp.float32)],
        ),
        compiler_params=pltpu.CompilerParams(
            dimension_semantics=("parallel", "arbitrary")),
    )(x_tok, w1, b1, wg2, we2, be2, wg3, we3, be3, yoh)

    # CrossEntropyLoss(reduction='mean'): average the per-sample losses.
    return jnp.mean(per_batch[:, 0, 0])


def _reference_loss(x, y, params):
    """Pure-JAX reference with identical math (exact reciprocal) for sanity check."""
    B, S, H = x.shape
    xt = x.reshape(B * S, H)
    h = xt @ params["w1"] + params["b1"]

    def moe(hh, wg, we, be):
        logits = hh @ wg
        probs = jax.nn.softmax(logits, axis=-1)
        e_idx = jnp.argmax(logits, axis=-1)
        out = jnp.zeros_like(hh)
        for e in range(NUM_EXPERTS):
            sel = (e_idx == e).astype(jnp.float32)[:, None]
            out = out + sel * probs[:, e:e + 1] * (hh @ we[e] + be[e][None, :])
        return out

    o2 = moe(h, params["wg2"], params["we2"], params["be2"])
    o3 = moe(o2, params["wg3"], params["we3"], params["be3"])
    hsum = h + o3
    sent = hsum.reshape(B, S, H).mean(axis=1)
    logp = jax.nn.log_softmax(sent, axis=-1)
    return -jnp.mean(logp[jnp.arange(B), y])


def _init_params(key):
    ks = jax.random.split(key, 8)
    bound = 1.0 / np.sqrt(HIDDEN)

    def u(k, shape):
        return jax.random.uniform(k, shape, jnp.float32, -bound, bound)

    return {
        "w1":  u(ks[0], (HIDDEN, HIDDEN)),
        "b1":  u(ks[1], (1, HIDDEN)),
        "wg2": u(ks[2], (HIDDEN, NUM_EXPERTS)),
        "we2": u(ks[3], (NUM_EXPERTS, HIDDEN, HIDDEN)),
        "be2": u(ks[4], (NUM_EXPERTS, HIDDEN)),
        "wg3": u(ks[5], (HIDDEN, NUM_EXPERTS)),
        "we3": u(ks[6], (NUM_EXPERTS, HIDDEN, HIDDEN)),
        "be3": u(ks[7], (NUM_EXPERTS, HIDDEN)),
    }


if __name__ == "__main__":
    key = jax.random.PRNGKey(0)
    kx, ky, kp = jax.random.split(key, 3)

    x = jax.random.normal(kx, (BATCH, SEQ, HIDDEN), jnp.float32)
    y = jax.random.randint(ky, (BATCH,), 0, NUM_CLASSES, jnp.int32)
    params = _init_params(kp)

    loss = jax.block_until_ready(simple_dynamic_moe_loss(x, y, params))
    ref = jax.block_until_ready(_reference_loss(x, y, params))

    # Tolerance loosened because the kernel uses the EUP approximate reciprocal
    # for the gate softmax normalizer (per the perf review).
    np.testing.assert_allclose(np.asarray(loss), np.asarray(ref), rtol=1e-2, atol=1e-2)

    print("KERNEL_OK")
</pallas_src>

<mosaic_0001>
module attributes {stable_mosaic.version = 11 : i64} {
  func.func @moe_forward_kernel(%arg0: i32, %arg1: i32, %arg2: memref<8x128xf32, #tpu.memory_space<vmem>>, %arg3: memref<128x128xf32, #tpu.memory_space<vmem>>, %arg4: memref<1x128xf32, #tpu.memory_space<vmem>>, %arg5: memref<128x128xf32, #tpu.memory_space<vmem>>, %arg6: memref<4x128x128xf32, #tpu.memory_space<vmem>>, %arg7: memref<4x128xf32, #tpu.memory_space<vmem>>, %arg8: memref<128x128xf32, #tpu.memory_space<vmem>>, %arg9: memref<4x128x128xf32, #tpu.memory_space<vmem>>, %arg10: memref<4x128xf32, #tpu.memory_space<vmem>>, %arg11: memref<1x1x128xf32, #tpu.memory_space<vmem>>, %arg12: memref<1x1x128xf32, #tpu.memory_space<vmem>>, %arg13: memref<1x128xf32, #tpu.memory_space<vmem>>) attributes {dimension_semantics = [#tpu.dimension_semantics<parallel>, #tpu.dimension_semantics<arbitrary>], iteration_bounds = array<i64: 2, 2>, scalar_prefetch = 0 : i64, scratch_operands = 1 : i64, tpu.core_type = #tpu.core_type<tc>, window_params = [{transform_indices = @transform_0, window_bounds = array<i64: 8, 128>}, {pipeline_mode = #tpu.pipeline_mode<synchronous>, transform_indices = @transform_1, window_bounds = array<i64: 128, 128>}, {pipeline_mode = #tpu.pipeline_mode<synchronous>, transform_indices = @transform_2, window_bounds = array<i64: 1, 128>}, {pipeline_mode = #tpu.pipeline_mode<synchronous>, transform_indices = @transform_3, window_bounds = array<i64: 128, 128>}, {pipeline_mode = #tpu.pipeline_mode<synchronous>, transform_indices = @transform_4, window_bounds = array<i64: 4, 128, 128>}, {pipeline_mode = #tpu.pipeline_mode<synchronous>, transform_indices = @transform_5, window_bounds = array<i64: 4, 128>}, {pipeline_mode = #tpu.pipeline_mode<synchronous>, transform_indices = @transform_6, window_bounds = array<i64: 128, 128>}, {pipeline_mode = #tpu.pipeline_mode<synchronous>, transform_indices = @transform_7, window_bounds = array<i64: 4, 128, 128>}, {pipeline_mode = #tpu.pipeline_mode<synchronous>, transform_indices = @transform_8, window_bounds = array<i64: 4, 128>}, {transform_indices = @transform_9, window_bounds = array<i64: 1, 1, 128>}, {transform_indices = @transform_10, window_bounds = array<i64: 1, 1, 128>}]} {
    %c0_i32 = arith.constant 0 : i32
    %0 = arith.cmpi eq, %arg1, %c0_i32 : i32
    %1 = arith.extui %0 : i1 to i32
    %c0_i32_0 = arith.constant 0 : i32
    %2 = arith.cmpi ne, %1, %c0_i32_0 : i32
    scf.if %2 {
      %cst_55 = arith.constant 0.000000e+00 : f32
      %190 = vector.broadcast %cst_55 : f32 to vector<1x128xf32>
      %c0_56 = arith.constant 0 : index
      %c0_57 = arith.constant 0 : index
      %191 = vector.load %arg13[%c0_56, %c0_57] : memref<1x128xf32, #tpu.memory_space<vmem>>, vector<1x128xf32>
      tpu.vector_store %arg13[%c0_56, %c0_57], %190 {strides = array<i32>} : memref<1x128xf32, #tpu.memory_space<vmem>>, vector<1x128xf32>,
    } else {
    }
    %c0 = arith.constant 0 : index
    %c0_1 = arith.constant 0 : index
    %3 = vector.load %arg2[%c0, %c0_1] : memref<8x128xf32, #tpu.memory_space<vmem>>, vector<8x128xf32>
    %c0_2 = arith.constant 0 : index
    %c0_3 = arith.constant 0 : index
    %4 = vector.load %arg3[%c0_2, %c0_3] : memref<128x128xf32, #tpu.memory_space<vmem>>, vector<128x128xf32>
    %cst = arith.constant dense<0.000000e+00> : vector<8x128xf32>
    %5 = tpu.matmul %3, %4, %cst {dimension_numbers = #tpu.dot_dimension_numbers<[1], [0], [0], [1], [0, 0, 1, 1], [], []>} : vector<8x128xf32>, vector<128x128xf32>, vector<8x128xf32> -> vector<8x128xf32>
    %c0_4 = arith.constant 0 : index
    %c0_5 = arith.constant 0 : index
    %6 = vector.load %arg4[%c0_4, %c0_5] : memref<1x128xf32, #tpu.memory_space<vmem>>, vector<1x128xf32>
    %7 = vector.broadcast %6 : vector<1x128xf32> to vector<8x128xf32>
    %8 = arith.addf %5, %7 : vector<8x128xf32>
    %c0_6 = arith.constant 0 : index
    %c0_7 = arith.constant 0 : index
    %9 = vector.load %arg5[%c0_6, %c0_7] : memref<128x128xf32, #tpu.memory_space<vmem>>, vector<128x128xf32>
    %c0_8 = arith.constant 0 : index
    %c0_9 = arith.constant 0 : index
    %c0_10 = arith.constant 0 : index
    %10 = vector.load %arg6[%c0_8, %c0_9, %c0_10] : memref<4x128x128xf32, #tpu.memory_space<vmem>>, vector<4x128x128xf32>
    %c0_11 = arith.constant 0 : index
    %c0_12 = arith.constant 0 : index
    %11 = vector.load %arg7[%c0_11, %c0_12] : memref<4x128xf32, #tpu.memory_space<vmem>>, vector<4x128xf32>
    %cst_13 = arith.constant dense<0.000000e+00> : vector<8x128xf32>
    %12 = tpu.matmul %8, %9, %cst_13 {dimension_numbers = #tpu.dot_dimension_numbers<[1], [0], [0], [1], [0, 0, 1, 1], [], []>} : vector<8x128xf32>, vector<128x128xf32>, vector<8x128xf32> -> vector<8x128xf32>
    %13 = tpu.iota {dimensions = array<i32: 1>} : vector<8x128xi32>
    %c4_i32 = arith.constant 4 : i32
    %14 = vector.broadcast %c4_i32 : i32 to vector<8x128xi32>
    %15 = arith.cmpi slt, %13, %14 : vector<8x128xi32>
    %cst_14 = arith.constant 0xFF800000 : f32
    %16 = vector.broadcast %cst_14 : f32 to vector<8x128xf32>
    %17 = arith.select %15, %12, %16 : vector<8x128xi1>, vector<8x128xf32>
    %cst_15 = arith.constant dense<0xFF800000> : vector<8xf32>
    %18 = vector.multi_reduction <maximumf>, %17, %cst_15 [1] : vector<8x128xf32> to vector<8xf32>
    %19 = vector.shape_cast %18 : vector<8xf32> to vector<8x1xf32>
    %20 = vector.broadcast %19 : vector<8x1xf32> to vector<8x128xf32>
    %21 = arith.subf %17, %20 : vector<8x128xf32>
    %22 = math.exp %21 : vector<8x128xf32>
    %cst_16 = arith.constant dense<0.000000e+00> : vector<8xf32>
    %23 = vector.multi_reduction <add>, %22, %cst_16 [1] : vector<8x128xf32> to vector<8xf32>
    %24 = vector.shape_cast %23 : vector<8xf32> to vector<8x1xf32>
    %25 = tpu.reciprocal %24 {approx = true} : vector<8x1xf32> -> vector<8x1xf32>
    %26 = vector.broadcast %25 : vector<8x1xf32> to vector<8x128xf32>
    %27 = arith.mulf %22, %26 : vector<8x128xf32>
    %28 = vector.broadcast %19 : vector<8x1xf32> to vector<8x128xf32>
    %29 = arith.cmpf oge, %17, %28 : vector<8x128xf32>
    %c4_i32_17 = arith.constant 4 : i32
    %30 = vector.broadcast %c4_i32_17 : i32 to vector<8x128xi32>
    %31 = arith.select %29, %13, %30 : vector<8x128xi1>, vector<8x128xi32>
    %cst_18 = arith.constant dense<2147483647> : vector<8xi32>
    %32 = vector.multi_reduction <minsi>, %31, %cst_18 [1] : vector<8x128xi32> to vector<8xi32>
    %33 = vector.shape_cast %32 : vector<8xi32> to vector<8x1xi32>
    %cst_19 = arith.constant 0.000000e+00 : f32
    %34 = vector.broadcast %cst_19 : f32 to vector<8x128xf32>
    %c0_i32_20 = arith.constant 0 : i32
    %35 = vector.broadcast %c0_i32_20 : i32 to vector<8x1xi32>
    %36 = arith.cmpi eq, %33, %35 : vector<8x1xi32>
    %37 = arith.extui %36 : vector<8x1xi1> to vector<8x1xi32>
    %38 = arith.sitofp %37 : vector<8x1xi32> to vector<8x1xf32>
    %39 = vector.extract_strided_slice %27 {offsets = [0, 0], sizes = [8, 1], strides = [1, 1]} : vector<8x128xf32> to vector<8x1xf32>
    %40 = arith.mulf %38, %39 : vector<8x1xf32>
    %41 = vector.extract_strided_slice %10 {offsets = [0, 0, 0], sizes = [1, 128, 128], strides = [1, 1, 1]} : vector<4x128x128xf32> to vector<1x128x128xf32>
    %42 = vector.shape_cast %41 : vector<1x128x128xf32> to vector<128x128xf32>
    %cst_21 = arith.constant dense<0.000000e+00> : vector<8x128xf32>
    %43 = tpu.matmul %8, %42, %cst_21 {dimension_numbers = #tpu.dot_dimension_numbers<[1], [0], [0], [1], [0, 0, 1, 1], [], []>} : vector<8x128xf32>, vector<128x128xf32>, vector<8x128xf32> -> vector<8x128xf32>
    %44 = vector.extract_strided_slice %11 {offsets = [0, 0], sizes = [1, 128], strides = [1, 1]} : vector<4x128xf32> to vector<1x128xf32>
    %45 = vector.broadcast %44 : vector<1x128xf32> to vector<8x128xf32>
    %46 = arith.addf %43, %45 : vector<8x128xf32>
    %47 = vector.broadcast %40 : vector<8x1xf32> to vector<8x128xf32>
    %48 = arith.mulf %47, %46 : vector<8x128xf32>
    %49 = arith.addf %34, %48 : vector<8x128xf32>
    %c1_i32 = arith.constant 1 : i32
    %50 = vector.broadcast %c1_i32 : i32 to vector<8x1xi32>
    %51 = arith.cmpi eq, %33, %50 : vector<8x1xi32>
    %52 = arith.extui %51 : vector<8x1xi1> to vector<8x1xi32>
    %53 = arith.sitofp %52 : vector<8x1xi32> to vector<8x1xf32>
    %54 = vector.extract_strided_slice %27 {offsets = [0, 1], sizes = [8, 1], strides = [1, 1]} : vector<8x128xf32> to vector<8x1xf32>
    %55 = arith.mulf %53, %54 : vector<8x1xf32>
    %56 = vector.extract_strided_slice %10 {offsets = [1, 0, 0], sizes = [1, 128, 128], strides = [1, 1, 1]} : vector<4x128x128xf32> to vector<1x128x128xf32>
    %57 = vector.shape_cast %56 : vector<1x128x128xf32> to vector<128x128xf32>
    %cst_22 = arith.constant dense<0.000000e+00> : vector<8x128xf32>
    %58 = tpu.matmul %8, %57, %cst_22 {dimension_numbers = #tpu.dot_dimension_numbers<[1], [0], [0], [1], [0, 0, 1, 1], [], []>} : vector<8x128xf32>, vector<128x128xf32>, vector<8x128xf32> -> vector<8x128xf32>
    %59 = vector.extract_strided_slice %11 {offsets = [1, 0], sizes = [1, 128], strides = [1, 1]} : vector<4x128xf32> to vector<1x128xf32>
    %60 = vector.broadcast %59 : vector<1x128xf32> to vector<8x128xf32>
    %61 = arith.addf %58, %60 : vector<8x128xf32>
    %62 = vector.broadcast %55 : vector<8x1xf32> to vector<8x128xf32>
    %63 = arith.mulf %62, %61 : vector<8x128xf32>
    %64 = arith.addf %49, %63 : vector<8x128xf32>
    %c2_i32 = arith.constant 2 : i32
    %65 = vector.broadcast %c2_i32 : i32 to vector<8x1xi32>
    %66 = arith.cmpi eq, %33, %65 : vector<8x1xi32>
    %67 = arith.extui %66 : vector<8x1xi1> to vector<8x1xi32>
    %68 = arith.sitofp %67 : vector<8x1xi32> to vector<8x1xf32>
    %69 = vector.extract_strided_slice %27 {offsets = [0, 2], sizes = [8, 1], strides = [1, 1]} : vector<8x128xf32> to vector<8x1xf32>
    %70 = arith.mulf %68, %69 : vector<8x1xf32>
    %71 = vector.extract_strided_slice %10 {offsets = [2, 0, 0], sizes = [1, 128, 128], strides = [1, 1, 1]} : vector<4x128x128xf32> to vector<1x128x128xf32>
    %72 = vector.shape_cast %71 : vector<1x128x128xf32> to vector<128x128xf32>
    %cst_23 = arith.constant dense<0.000000e+00> : vector<8x128xf32>
    %73 = tpu.matmul %8, %72, %cst_23 {dimension_numbers = #tpu.dot_dimension_numbers<[1], [0], [0], [1], [0, 0, 1, 1], [], []>} : vector<8x128xf32>, vector<128x128xf32>, vector<8x128xf32> -> vector<8x128xf32>
    %74 = vector.extract_strided_slice %11 {offsets = [2, 0], sizes = [1, 128], strides = [1, 1]} : vector<4x128xf32> to vector<1x128xf32>
    %75 = vector.broadcast %74 : vector<1x128xf32> to vector<8x128xf32>
    %76 = arith.addf %73, %75 : vector<8x128xf32>
    %77 = vector.broadcast %70 : vector<8x1xf32> to vector<8x128xf32>
    %78 = arith.mulf %77, %76 : vector<8x128xf32>
    %79 = arith.addf %64, %78 : vector<8x128xf32>
    %c3_i32 = arith.constant 3 : i32
    %80 = vector.broadcast %c3_i32 : i32 to vector<8x1xi32>
    %81 = arith.cmpi eq, %33, %80 : vector<8x1xi32>
    %82 = arith.extui %81 : vector<8x1xi1> to vector<8x1xi32>
    %83 = arith.sitofp %82 : vector<8x1xi32> to vector<8x1xf32>
    %84 = vector.extract_strided_slice %27 {offsets = [0, 3], sizes = [8, 1], strides = [1, 1]} : vector<8x128xf32> to vector<8x1xf32>
    %85 = arith.mulf %83, %84 : vector<8x1xf32>
    %86 = vector.extract_strided_slice %10 {offsets = [3, 0, 0], sizes = [1, 128, 128], strides = [1, 1, 1]} : vector<4x128x128xf32> to vector<1x128x128xf32>
    %87 = vector.shape_cast %86 : vector<1x128x128xf32> to vector<128x128xf32>
    %cst_24 = arith.constant dense<0.000000e+00> : vector<8x128xf32>
    %88 = tpu.matmul %8, %87, %cst_24 {dimension_numbers = #tpu.dot_dimension_numbers<[1], [0], [0], [1], [0, 0, 1, 1], [], []>} : vector<8x128xf32>, vector<128x128xf32>, vector<8x128xf32> -> vector<8x128xf32>
    %89 = vector.extract_strided_slice %11 {offsets = [3, 0], sizes = [1, 128], strides = [1, 1]} : vector<4x128xf32> to vector<1x128xf32>
    %90 = vector.broadcast %89 : vector<1x128xf32> to vector<8x128xf32>
    %91 = arith.addf %88, %90 : vector<8x128xf32>
    %92 = vector.broadcast %85 : vector<8x1xf32> to vector<8x128xf32>
    %93 = arith.mulf %92, %91 : vector<8x128xf32>
    %94 = arith.addf %79, %93 : vector<8x128xf32>
    %c0_25 = arith.constant 0 : index
    %c0_26 = arith.constant 0 : index
    %95 = vector.load %arg8[%c0_25, %c0_26] : memref<128x128xf32, #tpu.memory_space<vmem>>, vector<128x128xf32>
    %c0_27 = arith.constant 0 : index
    %c0_28 = arith.constant 0 : index
    %c0_29 = arith.constant 0 : index
    %96 = vector.load %arg9[%c0_27, %c0_28, %c0_29] : memref<4x128x128xf32, #tpu.memory_space<vmem>>, vector<4x128x128xf32>
    %c0_30 = arith.constant 0 : index
    %c0_31 = arith.constant 0 : index
    %97 = vector.load %arg10[%c0_30, %c0_31] : memref<4x128xf32, #tpu.memory_space<vmem>>, vector<4x128xf32>
    %cst_32 = arith.constant dense<0.000000e+00> : vector<8x128xf32>
    %98 = tpu.matmul %94, %95, %cst_32 {dimension_numbers = #tpu.dot_dimension_numbers<[1], [0], [0], [1], [0, 0, 1, 1], [], []>} : vector<8x128xf32>, vector<128x128xf32>, vector<8x128xf32> -> vector<8x128xf32>
    %99 = tpu.iota {dimensions = array<i32: 1>} : vector<8x128xi32>
    %c4_i32_33 = arith.constant 4 : i32
    %100 = vector.broadcast %c4_i32_33 : i32 to vector<8x128xi32>
    %101 = arith.cmpi slt, %99, %100 : vector<8x128xi32>
    %cst_34 = arith.constant 0xFF800000 : f32
    %102 = vector.broadcast %cst_34 : f32 to vector<8x128xf32>
    %103 = arith.select %101, %98, %102 : vector<8x128xi1>, vector<8x128xf32>
    %cst_35 = arith.constant dense<0xFF800000> : vector<8xf32>
    %104 = vector.multi_reduction <maximumf>, %103, %cst_35 [1] : vector<8x128xf32> to vector<8xf32>
    %105 = vector.shape_cast %104 : vector<8xf32> to vector<8x1xf32>
    %106 = vector.broadcast %105 : vector<8x1xf32> to vector<8x128xf32>
    %107 = arith.subf %103, %106 : vector<8x128xf32>
    %108 = math.exp %107 : vector<8x128xf32>
    %cst_36 = arith.constant dense<0.000000e+00> : vector<8xf32>
    %109 = vector.multi_reduction <add>, %108, %cst_36 [1] : vector<8x128xf32> to vector<8xf32>
    %110 = vector.shape_cast %109 : vector<8xf32> to vector<8x1xf32>
    %111 = tpu.reciprocal %110 {approx = true} : vector<8x1xf32> -> vector<8x1xf32>
    %112 = vector.broadcast %111 : vector<8x1xf32> to vector<8x128xf32>
    %113 = arith.mulf %108, %112 : vector<8x128xf32>
    %114 = vector.broadcast %105 : vector<8x1xf32> to vector<8x128xf32>
    %115 = arith.cmpf oge, %103, %114 : vector<8x128xf32>
    %c4_i32_37 = arith.constant 4 : i32
    %116 = vector.broadcast %c4_i32_37 : i32 to vector<8x128xi32>
    %117 = arith.select %115, %99, %116 : vector<8x128xi1>, vector<8x128xi32>
    %cst_38 = arith.constant dense<2147483647> : vector<8xi32>
    %118 = vector.multi_reduction <minsi>, %117, %cst_38 [1] : vector<8x128xi32> to vector<8xi32>
    %119 = vector.shape_cast %118 : vector<8xi32> to vector<8x1xi32>
    %cst_39 = arith.constant 0.000000e+00 : f32
    %120 = vector.broadcast %cst_39 : f32 to vector<8x128xf32>
    %c0_i32_40 = arith.constant 0 : i32
    %121 = vector.broadcast %c0_i32_40 : i32 to vector<8x1xi32>
    %122 = arith.cmpi eq, %119, %121 : vector<8x1xi32>
    %123 = arith.extui %122 : vector<8x1xi1> to vector<8x1xi32>
    %124 = arith.sitofp %123 : vector<8x1xi32> to vector<8x1xf32>
    %125 = vector.extract_strided_slice %113 {offsets = [0, 0], sizes = [8, 1], strides = [1, 1]} : vector<8x128xf32> to vector<8x1xf32>
    %126 = arith.mulf %124, %125 : vector<8x1xf32>
    %127 = vector.extract_strided_slice %96 {offsets = [0, 0, 0], sizes = [1, 128, 128], strides = [1, 1, 1]} : vector<4x128x128xf32> to vector<1x128x128xf32>
    %128 = vector.shape_cast %127 : vector<1x128x128xf32> to vector<128x128xf32>
    %cst_41 = arith.constant dense<0.000000e+00> : vector<8x128xf32>
    %129 = tpu.matmul %94, %128, %cst_41 {dimension_numbers = #tpu.dot_dimension_numbers<[1], [0], [0], [1], [0, 0, 1, 1], [], []>} : vector<8x128xf32>, vector<128x128xf32>, vector<8x128xf32> -> vector<8x128xf32>
    %130 = vector.extract_strided_slice %97 {offsets = [0, 0], sizes = [1, 128], strides = [1, 1]} : vector<4x128xf32> to vector<1x128xf32>
    %131 = vector.broadcast %130 : vector<1x128xf32> to vector<8x128xf32>
    %132 = arith.addf %129, %131 : vector<8x128xf32>
    %133 = vector.broadcast %126 : vector<8x1xf32> to vector<8x128xf32>
    %134 = arith.mulf %133, %132 : vector<8x128xf32>
    %135 = arith.addf %120, %134 : vector<8x128xf32>
    %c1_i32_42 = arith.constant 1 : i32
    %136 = vector.broadcast %c1_i32_42 : i32 to vector<8x1xi32>
    %137 = arith.cmpi eq, %119, %136 : vector<8x1xi32>
    %138 = arith.extui %137 : vector<8x1xi1> to vector<8x1xi32>
    %139 = arith.sitofp %138 : vector<8x1xi32> to vector<8x1xf32>
    %140 = vector.extract_strided_slice %113 {offsets = [0, 1], sizes = [8, 1], strides = [1, 1]} : vector<8x128xf32> to vector<8x1xf32>
    %141 = arith.mulf %139, %140 : vector<8x1xf32>
    %142 = vector.extract_strided_slice %96 {offsets = [1, 0, 0], sizes = [1, 128, 128], strides = [1, 1, 1]} : vector<4x128x128xf32> to vector<1x128x128xf32>
    %143 = vector.shape_cast %142 : vector<1x128x128xf32> to vector<128x128xf32>
    %cst_43 = arith.constant dense<0.000000e+00> : vector<8x128xf32>
    %144 = tpu.matmul %94, %143, %cst_43 {dimension_numbers = #tpu.dot_dimension_numbers<[1], [0], [0], [1], [0, 0, 1, 1], [], []>} : vector<8x128xf32>, vector<128x128xf32>, vector<8x128xf32> -> vector<8x128xf32>
    %145 = vector.extract_strided_slice %97 {offsets = [1, 0], sizes = [1, 128], strides = [1, 1]} : vector<4x128xf32> to vector<1x128xf32>
    %146 = vector.broadcast %145 : vector<1x128xf32> to vector<8x128xf32>
    %147 = arith.addf %144, %146 : vector<8x128xf32>
    %148 = vector.broadcast %141 : vector<8x1xf32> to vector<8x128xf32>
    %149 = arith.mulf %148, %147 : vector<8x128xf32>
    %150 = arith.addf %135, %149 : vector<8x128xf32>
    %c2_i32_44 = arith.constant 2 : i32
    %151 = vector.broadcast %c2_i32_44 : i32 to vector<8x1xi32>
    %152 = arith.cmpi eq, %119, %151 : vector<8x1xi32>
    %153 = arith.extui %152 : vector<8x1xi1> to vector<8x1xi32>
    %154 = arith.sitofp %153 : vector<8x1xi32> to vector<8x1xf32>
    %155 = vector.extract_strided_slice %113 {offsets = [0, 2], sizes = [8, 1], strides = [1, 1]} : vector<8x128xf32> to vector<8x1xf32>
    %156 = arith.mulf %154, %155 : vector<8x1xf32>
    %157 = vector.extract_strided_slice %96 {offsets = [2, 0, 0], sizes = [1, 128, 128], strides = [1, 1, 1]} : vector<4x128x128xf32> to vector<1x128x128xf32>
    %158 = vector.shape_cast %157 : vector<1x128x128xf32> to vector<128x128xf32>
    %cst_45 = arith.constant dense<0.000000e+00> : vector<8x128xf32>
    %159 = tpu.matmul %94, %158, %cst_45 {dimension_numbers = #tpu.dot_dimension_numbers<[1], [0], [0], [1], [0, 0, 1, 1], [], []>} : vector<8x128xf32>, vector<128x128xf32>, vector<8x128xf32> -> vector<8x128xf32>
    %160 = vector.extract_strided_slice %97 {offsets = [2, 0], sizes = [1, 128], strides = [1, 1]} : vector<4x128xf32> to vector<1x128xf32>
    %161 = vector.broadcast %160 : vector<1x128xf32> to vector<8x128xf32>
    %162 = arith.addf %159, %161 : vector<8x128xf32>
    %163 = vector.broadcast %156 : vector<8x1xf32> to vector<8x128xf32>
    %164 = arith.mulf %163, %162 : vector<8x128xf32>
    %165 = arith.addf %150, %164 : vector<8x128xf32>
    %c3_i32_46 = arith.constant 3 : i32
    %166 = vector.broadcast %c3_i32_46 : i32 to vector<8x1xi32>
    %167 = arith.cmpi eq, %119, %166 : vector<8x1xi32>
    %168 = arith.extui %167 : vector<8x1xi1> to vector<8x1xi32>
    %169 = arith.sitofp %168 : vector<8x1xi32> to vector<8x1xf32>
    %170 = vector.extract_strided_slice %113 {offsets = [0, 3], sizes = [8, 1], strides = [1, 1]} : vector<8x128xf32> to vector<8x1xf32>
    %171 = arith.mulf %169, %170 : vector<8x1xf32>
    %172 = vector.extract_strided_slice %96 {offsets = [3, 0, 0], sizes = [1, 128, 128], strides = [1, 1, 1]} : vector<4x128x128xf32> to vector<1x128x128xf32>
    %173 = vector.shape_cast %172 : vector<1x128x128xf32> to vector<128x128xf32>
    %cst_47 = arith.constant dense<0.000000e+00> : vector<8x128xf32>
    %174 = tpu.matmul %94, %173, %cst_47 {dimension_numbers = #tpu.dot_dimension_numbers<[1], [0], [0], [1], [0, 0, 1, 1], [], []>} : vector<8x128xf32>, vector<128x128xf32>, vector<8x128xf32> -> vector<8x128xf32>
    %175 = vector.extract_strided_slice %97 {offsets = [3, 0], sizes = [1, 128], strides = [1, 1]} : vector<4x128xf32> to vector<1x128xf32>
    %176 = vector.broadcast %175 : vector<1x128xf32> to vector<8x128xf32>
    %177 = arith.addf %174, %176 : vector<8x128xf32>
    %178 = vector.broadcast %171 : vector<8x1xf32> to vector<8x128xf32>
    %179 = arith.mulf %178, %177 : vector<8x128xf32>
    %180 = arith.addf %165, %179 : vector<8x128xf32>
    %181 = arith.addf %8, %180 : vector<8x128xf32>
    %c0_48 = arith.constant 0 : index
    %c0_49 = arith.constant 0 : index
    %182 = vector.load %arg13[%c0_48, %c0_49] : memref<1x128xf32, #tpu.memory_space<vmem>>, vector<1x128xf32>
    %cst_50 = arith.constant dense<0.000000e+00> : vector<128xf32>
    %183 = vector.multi_reduction <add>, %181, %cst_50 [0] : vector<8x128xf32> to vector<128xf32>
    %184 = vector.shape_cast %183 : vector<128xf32> to vector<1x128xf32>
    %185 = arith.addf %182, %184 : vector<1x128xf32>
    %c0_51 = arith.constant 0 : index
    %c0_52 = arith.constant 0 : index
    %186 = vector.load %arg13[%c0_51, %c0_52] : memref<1x128xf32, #tpu.memory_space<vmem>>, vector<1x128xf32>
    tpu.vector_store %arg13[%c0_51, %c0_52], %185 {strides = array<i32>} : memref<1x128xf32, #tpu.memory_space<vmem>>, vector<1x128xf32>,
    %c1_i32_53 = arith.constant 1 : i32
    %187 = arith.cmpi eq, %arg1, %c1_i32_53 : i32
    %188 = arith.extui %187 : i1 to i32
    %c0_i32_54 = arith.constant 0 : i32
    %189 = arith.cmpi ne, %188, %c0_i32_54 : i32
    scf.if %189 {
      %c0_55 = arith.constant 0 : index
      %c0_56 = arith.constant 0 : index
      %190 = vector.load %arg13[%c0_55, %c0_56] : memref<1x128xf32, #tpu.memory_space<vmem>>, vector<1x128xf32>
      %cst_57 = arith.constant 6.250000e-02 : f32
      %191 = vector.broadcast %cst_57 : f32 to vector<1x128xf32>
      %192 = arith.mulf %190, %191 : vector<1x128xf32>
      %193 = tpu.iota {dimensions = array<i32: 1>} : vector<1x128xi32>
      %c8_i32 = arith.constant 8 : i32
      %194 = vector.broadcast %c8_i32 : i32 to vector<1x128xi32>
      %195 = arith.cmpi slt, %193, %194 : vector<1x128xi32>
      %cst_58 = arith.constant 0xFF800000 : f32
      %196 = vector.broadcast %cst_58 : f32 to vector<1x128xf32>
      %197 = arith.select %195, %192, %196 : vector<1x128xi1>, vector<1x128xf32>
      %cst_59 = arith.constant dense<0xFF800000> : vector<1xf32>
      %198 = vector.multi_reduction <maximumf>, %197, %cst_59 [1] : vector<1x128xf32> to vector<1xf32>
      %199 = vector.shape_cast %198 : vector<1xf32> to vector<1x1xf32>
      %200 = vector.broadcast %199 : vector<1x1xf32> to vector<1x128xf32>
      %201 = arith.subf %197, %200 : vector<1x128xf32>
      %202 = math.exp %201 : vector<1x128xf32>
      %cst_60 = arith.constant dense<0.000000e+00> : vector<1xf32>
      %203 = vector.multi_reduction <add>, %202, %cst_60 [1] : vector<1x128xf32> to vector<1xf32>
      %204 = vector.shape_cast %203 : vector<1xf32> to vector<1x1xf32>
      %205 = math.log %204 : vector<1x1xf32>
      %206 = arith.addf %199, %205 : vector<1x1xf32>
      %c0_61 = arith.constant 0 : index
      %c0_62 = arith.constant 0 : index
      %c0_63 = arith.constant 0 : index
      %207 = vector.load %arg11[%c0_61, %c0_62, %c0_63] : memref<1x1x128xf32, #tpu.memory_space<vmem>>, vector<1x1x128xf32>
      %208 = vector.shape_cast %207 : vector<1x1x128xf32> to vector<1x128xf32>
      %209 = arith.mulf %208, %192 : vector<1x128xf32>
      %cst_64 = arith.constant dense<0.000000e+00> : vector<1xf32>
      %210 = vector.multi_reduction <add>, %209, %cst_64 [1] : vector<1x128xf32> to vector<1xf32>
      %211 = vector.shape_cast %210 : vector<1xf32> to vector<1x1xf32>
      %212 = arith.subf %206, %211 : vector<1x1xf32>
      %213 = vector.shape_cast %212 : vector<1x1xf32> to vector<1x1x1xf32>
      %214 = vector.shape_cast %213 : vector<1x1x1xf32> to vector<1x1x1xf32>
      %215 = vector.broadcast %214 : vector<1x1x1xf32> to vector<1x1x128xf32>
      %c0_65 = arith.constant 0 : index
      %c0_66 = arith.constant 0 : index
      %c0_67 = arith.constant 0 : index
      %216 = vector.load %arg12[%c0_65, %c0_66, %c0_67] : memref<1x1x128xf32, #tpu.memory_space<vmem>>, vector<1x1x128xf32>
      tpu.vector_store %arg12[%c0_65, %c0_66, %c0_67], %215 {strides = array<i32>} : memref<1x1x128xf32, #tpu.memory_space<vmem>>, vector<1x1x128xf32>,
    } else {
    }
    return
  }
  func.func @transform_0(%arg0: i32, %arg1: i32) -> (i32, i32) {
    %c2_i32 = arith.constant 2 : i32
    %0 = arith.muli %arg0, %c2_i32 : i32
    %1 = arith.addi %0, %arg1 : i32
    %c0_i32 = arith.constant 0 : i32
    %c0_i32_0 = arith.constant 0 : i32
    return %1, %c0_i32 : i32, i32
  }
  func.func @transform_1(%arg0: i32, %arg1: i32) -> (i32, i32) {
    %c0_i32 = arith.constant 0 : i32
    %c0_i32_0 = arith.constant 0 : i32
    %c0_i32_1 = arith.constant 0 : i32
    return %c0_i32, %c0_i32_0 : i32, i32
  }
  func.func @transform_2(%arg0: i32, %arg1: i32) -> (i32, i32) {
    %c0_i32 = arith.constant 0 : i32
    %c0_i32_0 = arith.constant 0 : i32
    %c0_i32_1 = arith.constant 0 : i32
    return %c0_i32, %c0_i32_0 : i32, i32
  }
  func.func @transform_3(%arg0: i32, %arg1: i32) -> (i32, i32) {
    %c0_i32 = arith.constant 0 : i32
    %c0_i32_0 = arith.constant 0 : i32
    %c0_i32_1 = arith.constant 0 : i32
    return %c0_i32, %c0_i32_0 : i32, i32
  }
  func.func @transform_4(%arg0: i32, %arg1: i32) -> (i32, i32, i32) {
    %c0_i32 = arith.constant 0 : i32
    %c0_i32_0 = arith.constant 0 : i32
    %c0_i32_1 = arith.constant 0 : i32
    %c0_i32_2 = arith.constant 0 : i32
    return %c0_i32, %c0_i32_0, %c0_i32_1 : i32, i32, i32
  }
  func.func @transform_5(%arg0: i32, %arg1: i32) -> (i32, i32) {
    %c0_i32 = arith.constant 0 : i32
    %c0_i32_0 = arith.constant 0 : i32
    %c0_i32_1 = arith.constant 0 : i32
    return %c0_i32, %c0_i32_0 : i32, i32
  }
  func.func @transform_6(%arg0: i32, %arg1: i32) -> (i32, i32) {
    %c0_i32 = arith.constant 0 : i32
    %c0_i32_0 = arith.constant 0 : i32
    %c0_i32_1 = arith.constant 0 : i32
    return %c0_i32, %c0_i32_0 : i32, i32
  }
  func.func @transform_7(%arg0: i32, %arg1: i32) -> (i32, i32, i32) {
    %c0_i32 = arith.constant 0 : i32
    %c0_i32_0 = arith.constant 0 : i32
    %c0_i32_1 = arith.constant 0 : i32
    %c0_i32_2 = arith.constant 0 : i32
    return %c0_i32, %c0_i32_0, %c0_i32_1 : i32, i32, i32
  }
  func.func @transform_8(%arg0: i32, %arg1: i32) -> (i32, i32) {
    %c0_i32 = arith.constant 0 : i32
    %c0_i32_0 = arith.constant 0 : i32
    %c0_i32_1 = arith.constant 0 : i32
    return %c0_i32, %c0_i32_0 : i32, i32
  }
  func.func @transform_9(%arg0: i32, %arg1: i32) -> (i32, i32, i32) {
    %c0_i32 = arith.constant 0 : i32
    %c0_i32_0 = arith.constant 0 : i32
    %c0_i32_1 = arith.constant 0 : i32
    return %arg0, %c0_i32, %c0_i32_0 : i32, i32, i32
  }
  func.func @transform_10(%arg0: i32, %arg1: i32) -> (i32, i32, i32) {
    %c0_i32 = arith.constant 0 : i32
    %c0_i32_0 = arith.constant 0 : i32
    %c0_i32_1 = arith.constant 0 : i32
    return %arg0, %c0_i32, %c0_i32_0 : i32, i32, i32
  }
}

</mosaic_0001>

<llo_original>
// kernel: tpu_custom_call.1
$region0: #{tpu_custom_call.1}
  #allocation0 [shape = 'u32[]', space=smem, size = 0x4, offset = 0x4, fixed_abs, tag = 'smem constant byte address 0x4 - core index']
  #allocation1 [shape = 'u32[144,128]{1,0:T(1,128)}', space=vmem, size = 0x12000, scoped, tag = 'internal scratch']
  #allocation2 [shape = 'f32[1,128]{1,0:T(1,128)}', space=vmem, size = 0x200, scoped, tag = 'scratch operand']
  %s0 = inlined_call_operand.hbm [shape: f32[32,128], index: 0, kind: input, shape index: {}]
  %s1 = inlined_call_operand.hbm [shape: f32[128,128], index: 1, kind: input, shape index: {}]
  %s2 = inlined_call_operand.hbm [shape: f32[1,128], index: 2, kind: input, shape index: {}]
  %s3 = inlined_call_operand.hbm [shape: f32[128,128], index: 3, kind: input, shape index: {}]
  %s4 = inlined_call_operand.hbm [shape: f32[4,128,128], index: 4, kind: input, shape index: {}]
  %s5 = inlined_call_operand.vmem [shape: f32[4,128], index: 5, kind: input, shape index: {}]
  %s6 = inlined_call_operand.hbm [shape: f32[128,128], index: 6, kind: input, shape index: {}]
  %s7 = inlined_call_operand.hbm [shape: f32[4,128,128], index: 7, kind: input, shape index: {}]
  %s8 = inlined_call_operand.vmem [shape: f32[4,128], index: 8, kind: input, shape index: {}]
  %s9 = inlined_call_operand.vmem [shape: f32[2,1,128], index: 9, kind: input, shape index: {}]
  %s10 = inlined_call_operand.hbm [shape: f32[2,1,128], index: 10, kind: output, shape index: {}]
  %s11 = sld [smem:[#allocation0]]
  $region109: #{tpu_custom_call.1} parent=0
    _
  %s13 = ssub.s32 1, %s11
  %s14 = scalar_select 0, %s13, %s11
  $region1: #{tpu_custom_call.1} parent=0
    #allocation3 [shape = 'u8[8192]{0}', space=vmem, size = 0x2000, scoped, tag = 'input window, operand 0']
    #allocation4 [shape = 's32[2]{0}', space=sflag, size = 0x8, scoped, tag = 'scoped memory for tpu_custom_call.1']
    #allocation5 [shape = 's32[2]{0}', space=sflag, size = 0x8, scoped, tag = 'scoped memory for tpu_custom_call.1']
    #allocation6 [shape = 'u8[65536]{0}', space=vmem, size = 0x10000, scoped, tag = 'input window, operand 1, single buffered']
    #allocation7 [shape = 's32[1]{0}', space=sflag, size = 0x4, scoped, tag = 'scoped memory for tpu_custom_call.1']
    #allocation8 [shape = 'u8[512]{0}', space=vmem, size = 0x400, scoped, tag = 'input window, operand 2, single buffered']
    #allocation9 [shape = 'u8[65536]{0}', space=vmem, size = 0x10000, scoped, tag = 'input window, operand 3, single buffered']
    #allocation10 [shape = 's32[1]{0}', space=sflag, size = 0x4, scoped, tag = 'scoped memory for tpu_custom_call.1']
    #allocation11 [shape = 'u8[262144]{0}', space=vmem, size = 0x40000, scoped, tag = 'input window, operand 4, single buffered']
    #allocation12 [shape = 'u8[65536]{0}', space=vmem, size = 0x10000, scoped, tag = 'input window, operand 6, single buffered']
    #allocation13 [shape = 's32[1]{0}', space=sflag, size = 0x4, scoped, tag = 'scoped memory for tpu_custom_call.1']
    #allocation14 [shape = 'u8[262144]{0}', space=vmem, size = 0x40000, scoped, tag = 'input window, operand 7, single buffered']
    #allocation15 [shape = 'u8[1024]{0}', space=vmem, size = 0x400, scoped, tag = 'output window, operand 0']
    %15 = vsyncpa [#allocation4], 0
    %s16 = scalar_lea.sflag [#allocation4], 1
    %17 = vsyncpa %s16, 0
    %18 = vsyncpa [#allocation7], 0
    %19 = vsyncpa [#allocation10], 0
    %20 = vsyncpa [#allocation13], 0
    %21 = vsyncpa [#allocation5], 0
    %s22 = scalar_lea.sflag [#allocation5], 1
    %23 = vsyncpa %s22, 0
    loop: start=0, step=1, limit=6
    $region2: #{tpu_custom_call.1} parent=1 // loop_pre_header
      _
    $region3: #{tpu_custom_call.1} parent=1 // loop_header
      %s25 = sphi 0, %s29
      %p26 = scmp.ge.s32.totalorder %s25, 6
      %s32 = sphi 0, %s44
      %s33 = sphi 0, %s40
      %s34 = sphi 0, %s32
      %s35 = sphi 0, %s33
      %s36 = sphi 0, %s34
      %s37 = sphi 0, %s35
      %s51 = sphi 0, %s53
      %s54 = sphi 0, %s51
      %s55 = sphi 0, %s54
      %s71 = sphi 0, %s55
      %s75 = sphi 0, %s75
      %s77 = sphi 0, %s75
      %s78 = sphi 0, %s77
      %s92 = sphi 0, %s78
      %s96 = sphi 0, %s96
      %s98 = sphi 0, %s96
      %s99 = sphi 0, %s98
      %s113 = sphi 0, %s99
      %s117 = sphi 0, %s117
      %s119 = sphi 0, %s117
      %s120 = sphi 0, %s119
      %s134 = sphi 0, %s120
      %s138 = sphi 0, %s138
      %s140 = sphi 0, %s138
      %s141 = sphi 0, %s140
      %s155 = sphi 0, %s141
      %s159 = sphi 0, %s159
      %s161 = sphi 0, %s159
      %s162 = sphi 0, %s161
      %s176 = sphi 0, %s162
      %s180 = sphi 0, %s180
      %s182 = sphi 0, %s180
      %s183 = sphi 0, %s182
      %s197 = sphi 0, %s183
      %s201 = sphi 0, %s201
      %s203 = sphi 0, %s201
      %s204 = sphi 0, %s203
      %s218 = sphi 0, %s204
      %s222 = sphi 0, %s222
      %s224 = sphi 0, %s222
      %s225 = sphi 0, %s224
      %s239 = sphi 0, %s225
      %s245 = sphi 0, %s247
      %s248 = sphi 0, %s245
      %s249 = sphi 0, %s248
      %s265 = sphi 0, %s249
      %s271 = sphi 0, %s273
      %s274 = sphi 0, %s271
      %s275 = sphi 0, %s274
      %s291 = sphi 0, %s275
    $region4: #{tpu_custom_call.1} parent=1 // loop_header_branch
      %28 = sbr.rel (%p26) target = $region8
    $region5: #{tpu_custom_call.1} parent=1 // loop_body
      %s30 = ssub.s32 %s25, 1
      %s31 = ssub.s32 %s25, 2
      %s38 = sadd.s32 1, %s33
      %p39 = scmp.ge.s32.totalorder %s38, 2
      %s40 = scalar_select %p39, 0, %s38
      %s41 = sadd.s32 1, %s32
      %s42 = scalar_select %p39, %s41, %s32
      %p43 = scmp.ge.s32.totalorder %s42, 2
      %s44 = scalar_select %p43, 0, %s42
      %s45 = smul.u32 %s32, 2
      %s46 = sadd.s32 %s45, %s33
      %s47 = smul.u32 %s44, 2
      %s48 = sadd.s32 %s47, %s40
      %s49 = ssub.s32 %s46, %s48
      %p50 = scmp.eq.s32.totalorder %s49, 0
      %s52 = sadd.s32 %s51, 1
      %s53 = scalar_select %p50, %s51, %s52
      %p56 = pneg %p50
      %p57 = scmp.eq.s32.totalorder %s25, 3
      %p58 = por %p56, %p57
      %p59 = scmp.ne.s32.totalorder %s51, %s54
      %p60 = scmp.eq.s32.totalorder %s25, 0
      %p61 = por %p59, %p60
      %p62 = scmp.ne.s32.totalorder %s51, %s54
      %p63 = scmp.eq.s32.totalorder %s30, 3
      %p64 = por %p62, %p63
      %p65 = scmp.ne.s32.totalorder %s54, %s55
      %p66 = scmp.eq.s32.totalorder %s30, 0
      %p67 = por %p65, %p66
      %p68 = scmp.ne.s32.totalorder %s54, %s55
      %p69 = scmp.eq.s32.totalorder %s31, 3
      %p70 = por %p68, %p69
      %p72 = scmp.ne.s32.totalorder %s55, %s71
      %p73 = scmp.eq.s32.totalorder %s31, 0
      %p74 = por %p72, %p73
      %s76 = sadd.s32 %s75, 1
      %p79 = scmp.eq.s32.totalorder %s25, 3
      %p80 = scmp.ne.s32.totalorder %s75, %s77
      %p81 = scmp.eq.s32.totalorder %s25, 0
      %p82 = por %p80, %p81
      %p83 = scmp.ne.s32.totalorder %s75, %s77
      %p84 = scmp.eq.s32.totalorder %s30, 3
      %p85 = por %p83, %p84
      %p86 = scmp.ne.s32.totalorder %s77, %s78
      %p87 = scmp.eq.s32.totalorder %s30, 0
      %p88 = por %p86, %p87
      %p89 = scmp.ne.s32.totalorder %s77, %s78
      %p90 = scmp.eq.s32.totalorder %s31, 3
      %p91 = por %p89, %p90
      %p93 = scmp.ne.s32.totalorder %s78, %s92
      %p94 = scmp.eq.s32.totalorder %s31, 0
      %p95 = por %p93, %p94
      %s97 = sadd.s32 %s96, 1
      %p100 = scmp.eq.s32.totalorder %s25, 3
      %p101 = scmp.ne.s32.totalorder %s96, %s98
      %p102 = scmp.eq.s32.totalorder %s25, 0
      %p103 = por %p101, %p102
      %p104 = scmp.ne.s32.totalorder %s96, %s98
      %p105 = scmp.eq.s32.totalorder %s30, 3
      %p106 = por %p104, %p105
      %p107 = scmp.ne.s32.totalorder %s98, %s99
      %p108 = scmp.eq.s32.totalorder %s30, 0
      %p109 = por %p107, %p108
      %p110 = scmp.ne.s32.totalorder %s98, %s99
      %p111 = scmp.eq.s32.totalorder %s31, 3
      %p112 = por %p110, %p111
      %p114 = scmp.ne.s32.totalorder %s99, %s113
      %p115 = scmp.eq.s32.totalorder %s31, 0
      %p116 = por %p114, %p115
      %s118 = sadd.s32 %s117, 1
      %p121 = scmp.eq.s32.totalorder %s25, 3
      %p122 = scmp.ne.s32.totalorder %s117, %s119
      %p123 = scmp.eq.s32.totalorder %s25, 0
      %p124 = por %p122, %p123
      %p125 = scmp.ne.s32.totalorder %s117, %s119
      %p126 = scmp.eq.s32.totalorder %s30, 3
      %p127 = por %p125, %p126
      %p128 = scmp.ne.s32.totalorder %s119, %s120
      %p129 = scmp.eq.s32.totalorder %s30, 0
      %p130 = por %p128, %p129
      %p131 = scmp.ne.s32.totalorder %s119, %s120
      %p132 = scmp.eq.s32.totalorder %s31, 3
      %p133 = por %p131, %p132
      %p135 = scmp.ne.s32.totalorder %s120, %s134
      %p136 = scmp.eq.s32.totalorder %s31, 0
      %p137 = por %p135, %p136
      %s139 = sadd.s32 %s138, 1
      %p142 = scmp.eq.s32.totalorder %s25, 3
      %p143 = scmp.ne.s32.totalorder %s138, %s140
      %p144 = scmp.eq.s32.totalorder %s25, 0
      %p145 = por %p143, %p144
      %p146 = scmp.ne.s32.totalorder %s138, %s140
      %p147 = scmp.eq.s32.totalorder %s30, 3
      %p148 = por %p146, %p147
      %p149 = scmp.ne.s32.totalorder %s140, %s141
      %p150 = scmp.eq.s32.totalorder %s30, 0
      %p151 = por %p149, %p150
      %p152 = scmp.ne.s32.totalorder %s140, %s141
      %p153 = scmp.eq.s32.totalorder %s31, 3
      %p154 = por %p152, %p153
      %p156 = scmp.ne.s32.totalorder %s141, %s155
      %p157 = scmp.eq.s32.totalorder %s31, 0
      %p158 = por %p156, %p157
      %s160 = sadd.s32 %s159, 1
      %p163 = scmp.eq.s32.totalorder %s25, 3
      %p164 = scmp.ne.s32.totalorder %s159, %s161
      %p165 = scmp.eq.s32.totalorder %s25, 0
      %p166 = por %p164, %p165
      %p167 = scmp.ne.s32.totalorder %s159, %s161
      %p168 = scmp.eq.s32.totalorder %s30, 3
      %p169 = por %p167, %p168
      %p170 = scmp.ne.s32.totalorder %s161, %s162
      %p171 = scmp.eq.s32.totalorder %s30, 0
      %p172 = por %p170, %p171
      %p173 = scmp.ne.s32.totalorder %s161, %s162
      %p174 = scmp.eq.s32.totalorder %s31, 3
      %p175 = por %p173, %p174
      %p177 = scmp.ne.s32.totalorder %s162, %s176
      %p178 = scmp.eq.s32.totalorder %s31, 0
      %p179 = por %p177, %p178
      %s181 = sadd.s32 %s180, 1
      %p184 = scmp.eq.s32.totalorder %s25, 3
      %p185 = scmp.ne.s32.totalorder %s180, %s182
      %p186 = scmp.eq.s32.totalorder %s25, 0
      %p187 = por %p185, %p186
      %p188 = scmp.ne.s32.totalorder %s180, %s182
      %p189 = scmp.eq.s32.totalorder %s30, 3
      %p190 = por %p188, %p189
      %p191 = scmp.ne.s32.totalorder %s182, %s183
      %p192 = scmp.eq.s32.totalorder %s30, 0
      %p193 = por %p191, %p192
      %p194 = scmp.ne.s32.totalorder %s182, %s183
      %p195 = scmp.eq.s32.totalorder %s31, 3
      %p196 = por %p194, %p195
      %p198 = scmp.ne.s32.totalorder %s183, %s197
      %p199 = scmp.eq.s32.totalorder %s31, 0
      %p200 = por %p198, %p199
      %s202 = sadd.s32 %s201, 1
      %p205 = scmp.eq.s32.totalorder %s25, 3
      %p206 = scmp.ne.s32.totalorder %s201, %s203
      %p207 = scmp.eq.s32.totalorder %s25, 0
      %p208 = por %p206, %p207
      %p209 = scmp.ne.s32.totalorder %s201, %s203
      %p210 = scmp.eq.s32.totalorder %s30, 3
      %p211 = por %p209, %p210
      %p212 = scmp.ne.s32.totalorder %s203, %s204
      %p213 = scmp.eq.s32.totalorder %s30, 0
      %p214 = por %p212, %p213
      %p215 = scmp.ne.s32.totalorder %s203, %s204
      %p216 = scmp.eq.s32.totalorder %s31, 3
      %p217 = por %p215, %p216
      %p219 = scmp.ne.s32.totalorder %s204, %s218
      %p220 = scmp.eq.s32.totalorder %s31, 0
      %p221 = por %p219, %p220
      %s223 = sadd.s32 %s222, 1
      %p226 = scmp.eq.s32.totalorder %s25, 3
      %p227 = scmp.ne.s32.totalorder %s222, %s224
      %p228 = scmp.eq.s32.totalorder %s25, 0
      %p229 = por %p227, %p228
      %p230 = scmp.ne.s32.totalorder %s222, %s224
      %p231 = scmp.eq.s32.totalorder %s30, 3
      %p232 = por %p230, %p231
      %p233 = scmp.ne.s32.totalorder %s224, %s225
      %p234 = scmp.eq.s32.totalorder %s30, 0
      %p235 = por %p233, %p234
      %p236 = scmp.ne.s32.totalorder %s224, %s225
      %p237 = scmp.eq.s32.totalorder %s31, 3
      %p238 = por %p236, %p237
      %p240 = scmp.ne.s32.totalorder %s225, %s239
      %p241 = scmp.eq.s32.totalorder %s31, 0
      %p242 = por %p240, %p241
      %s243 = ssub.s32 %s32, %s44
      %p244 = scmp.eq.s32.totalorder %s243, 0
      %s246 = sadd.s32 %s245, 1
      %s247 = scalar_select %p244, %s245, %s246
      %p250 = pneg %p244
      %p251 = scmp.eq.s32.totalorder %s25, 3
      %p252 = por %p250, %p251
      %p253 = scmp.ne.s32.totalorder %s245, %s248
      %p254 = scmp.eq.s32.totalorder %s25, 0
      %p255 = por %p253, %p254
      %p256 = scmp.ne.s32.totalorder %s245, %s248
      %p257 = scmp.eq.s32.totalorder %s30, 3
      %p258 = por %p256, %p257
      %p259 = scmp.ne.s32.totalorder %s248, %s249
      %p260 = scmp.eq.s32.totalorder %s30, 0
      %p261 = por %p259, %p260
      %p262 = scmp.ne.s32.totalorder %s248, %s249
      %p263 = scmp.eq.s32.totalorder %s31, 3
      %p264 = por %p262, %p263
      %p266 = scmp.ne.s32.totalorder %s249, %s265
      %p267 = scmp.eq.s32.totalorder %s31, 0
      %p268 = por %p266, %p267
      %s269 = ssub.s32 %s32, %s44
      %p270 = scmp.eq.s32.totalorder %s269, 0
      %s272 = sadd.s32 %s271, 1
      %s273 = scalar_select %p270, %s271, %s272
      %p276 = pneg %p270
      %p277 = scmp.eq.s32.totalorder %s25, 3
      %p278 = por %p276, %p277
      %p279 = scmp.ne.s32.totalorder %s271, %s274
      %p280 = scmp.eq.s32.totalorder %s25, 0
      %p281 = por %p279, %p280
      %p282 = scmp.ne.s32.totalorder %s271, %s274
      %p283 = scmp.eq.s32.totalorder %s30, 3
      %p284 = por %p282, %p283
      %p285 = scmp.ne.s32.totalorder %s274, %s275
      %p286 = scmp.eq.s32.totalorder %s30, 0
      %p287 = por %p285, %p286
      %p288 = scmp.ne.s32.totalorder %s274, %s275
      %p289 = scmp.eq.s32.totalorder %s31, 3
      %p290 = por %p288, %p289
      %p292 = scmp.ne.s32.totalorder %s275, %s291
      %p293 = scmp.eq.s32.totalorder %s31, 0
      %p294 = por %p292, %p293
      %p295 = scmp.le.s32.totalorder 1, %s25
      %p296 = scmp.lt.s32.totalorder %s25, 5
      %p297 = pnand %p295, %p296
      %p298 = pneg %p297
      // Predicated region
      $region9: #{tpu_custom_call.1} parent=5 // pred_check
        _
      $region10: #{tpu_custom_call.1} parent=5 // pred_check_branch
        %300 = sbr.rel (%p297) target = $region12
      $region11: #{tpu_custom_call.1} parent=5 // pred_region
        %s301 = ssub.s32 %s25, 1
        // Predicated region
        $region13: #{tpu_custom_call.1} parent=11 // pred_check
          %p302 = pneg %p88
        $region14: #{tpu_custom_call.1} parent=11 // pred_check_branch
          %304 = sbr.rel (%p302) target = $region16
        $region15: #{tpu_custom_call.1} parent=11 // pred_region
          %s306 = ssub.s32 2048, 2048
          %307 = vsyncadd [#allocation7], %s306
          %s308 = sshll.u32 [#allocation6], 4
          %s309 = int_to_ptr.vmem [resolvable:$true] %s308
          %314 = dma.hbm_to_vmem [thread:$0]  %s1, 2048, %s309, [#allocation7], 128, 128, 8
        $region16: #{tpu_custom_call.1} parent=11 // pred_fallthru
          _
        // Predicated region
        $region17: #{tpu_custom_call.1} parent=11 // pred_check
          %p315 = pneg %p109
        $region18: #{tpu_custom_call.1} parent=11 // pred_check_branch
          %317 = sbr.rel (%p315) target = $region20
        $region19: #{tpu_custom_call.1} parent=11 // pred_region
          %s319 = ssub.s32 16, 16
          %320 = vsyncadd [#allocation7], %s319
          %s322 = sshll.u32 [#allocation8], 4
          %s323 = int_to_ptr.vmem [resolvable:$true] %s322
          %325 = dma.hbm_to_vmem [thread:$0]  %s2, 16, %s323, [#allocation7]
        $region20: #{tpu_custom_call.1} parent=11 // pred_fallthru
          _
        // Predicated region
        $region21: #{tpu_custom_call.1} parent=11 // pred_check
          %p326 = pneg %p130
        $region22: #{tpu_custom_call.1} parent=11 // pred_check_branch
          %328 = sbr.rel (%p326) target = $region24
        $region23: #{tpu_custom_call.1} parent=11 // pred_region
          %s330 = ssub.s32 2048, 2048
          %331 = vsyncadd [#allocation10], %s330
          %s332 = sshll.u32 [#allocation9], 4
          %s333 = int_to_ptr.vmem [resolvable:$true] %s332
          %338 = dma.hbm_to_vmem [thread:$0]  %s3, 2048, %s333, [#allocation10], 128, 128, 8
        $region24: #{tpu_custom_call.1} parent=11 // pred_fallthru
          _
        // Predicated region
        $region25: #{tpu_custom_call.1} parent=11 // pred_check
          %p339 = pneg %p151
        $region26: #{tpu_custom_call.1} parent=11 // pred_check_branch
          %341 = sbr.rel (%p339) target = $region28
        $region27: #{tpu_custom_call.1} parent=11 // pred_region
          %s343 = ssub.s32 8192, 8192
          %344 = vsyncadd [#allocation10], %s343
          %s345 = sshll.u32 [#allocation11], 4
          %s346 = int_to_ptr.vmem [resolvable:$true] %s345
          %351 = dma.hbm_to_vmem [thread:$0]  %s4, 8192, %s346, [#allocation10], 128, 128, 8
        $region28: #{tpu_custom_call.1} parent=11 // pred_fallthru
          _
        // Predicated region
        $region29: #{tpu_custom_call.1} parent=11 // pred_check
          %p352 = pneg %p172
        $region30: #{tpu_custom_call.1} parent=11 // pred_check_branch
          %354 = sbr.rel (%p352) target = $region32
        $region31: #{tpu_custom_call.1} parent=11 // pred_region
          _
        $region32: #{tpu_custom_call.1} parent=11 // pred_fallthru
          _
        // Predicated region
        $region33: #{tpu_custom_call.1} parent=11 // pred_check
          %p355 = pneg %p193
        $region34: #{tpu_custom_call.1} parent=11 // pred_check_branch
          %357 = sbr.rel (%p355) target = $region36
        $region35: #{tpu_custom_call.1} parent=11 // pred_region
          %s359 = ssub.s32 2048, 2048
          %360 = vsyncadd [#allocation13], %s359
          %s361 = sshll.u32 [#allocation12], 4
          %s362 = int_to_ptr.vmem [resolvable:$true] %s361
          %367 = dma.hbm_to_vmem [thread:$0]  %s6, 2048, %s362, [#allocation13], 128, 128, 8
        $region36: #{tpu_custom_call.1} parent=11 // pred_fallthru
          _
        // Predicated region
        $region37: #{tpu_custom_call.1} parent=11 // pred_check
          %p368 = pneg %p214
        $region38: #{tpu_custom_call.1} parent=11 // pred_check_branch
          %370 = sbr.rel (%p368) target = $region40
        $region39: #{tpu_custom_call.1} parent=11 // pred_region
          %s372 = ssub.s32 8192, 8192
          %373 = vsyncadd [#allocation13], %s372
          %s374 = sshll.u32 [#allocation14], 4
          %s375 = int_to_ptr.vmem [resolvable:$true] %s374
          %380 = dma.hbm_to_vmem [thread:$0]  %s7, 8192, %s375, [#allocation13], 128, 128, 8
        $region40: #{tpu_custom_call.1} parent=11 // pred_fallthru
          _
        // Predicated region
        $region41: #{tpu_custom_call.1} parent=11 // pred_check
          %p381 = pneg %p235
        $region42: #{tpu_custom_call.1} parent=11 // pred_check_branch
          %383 = sbr.rel (%p381) target = $region44
        $region43: #{tpu_custom_call.1} parent=11 // pred_region
          _
        $region44: #{tpu_custom_call.1} parent=11 // pred_fallthru
          _
      $region12: #{tpu_custom_call.1} parent=5 // pred_fallthru
        _
      %p384 = scmp.lt.s32.totalorder %s25, 4
      // Predicated region
      $region45: #{tpu_custom_call.1} parent=5 // pred_check
        %p385 = pneg %p384
      $region46: #{tpu_custom_call.1} parent=5 // pred_check_branch
        %387 = sbr.rel (%p385) target = $region48
      $region47: #{tpu_custom_call.1} parent=5 // pred_region
        // Predicated region
        $region49: #{tpu_custom_call.1} parent=47 // pred_check
          %p388 = pneg %p61
        $region50: #{tpu_custom_call.1} parent=47 // pred_check_branch
          %390 = sbr.rel (%p388) target = $region52
        $region51: #{tpu_custom_call.1} parent=47 // pred_region
          %s391 = sand.u32 %s51, 1
          %s392 = scalar_lea.sflag [#allocation4], %s391
          %s393 = sand.u32 %s51, 1
          %s394 = smul.addr %s393, 8
          %s395 = scalar_lea.vmem [#allocation3], %s394
          %s396 = smul.u32 %s32, 2
          %s397 = sadd.s32 %s396, %s33
          %s399 = ssub.s32 128, 128
          %400 = vsyncadd %s392, %s399
          %s401 = smul.addr %s397, 128
          %s402 = scalar_lea.hbm %s0, %s401
          %s404 = sshll.u32 %s395, 4
          %s405 = int_to_ptr.vmem [resolvable:$true] %s404
          %407 = dma.hbm_to_vmem [thread:$0]  %s402, 128, %s405, %s392
        $region52: #{tpu_custom_call.1} parent=47 // pred_fallthru
          _
        // Predicated region
        $region53: #{tpu_custom_call.1} parent=47 // pred_check
          %p408 = pneg %p255
        $region54: #{tpu_custom_call.1} parent=47 // pred_check_branch
          %410 = sbr.rel (%p408) target = $region56
        $region55: #{tpu_custom_call.1} parent=47 // pred_region
          %p411 = scmp.lt.s32.totalorder %s32, 1
          %s412 = scalar_select %p411, %s32, 1
          %s413 = scalar_lea.vmem %s9, %s412
        $region56: #{tpu_custom_call.1} parent=47 // pred_fallthru
          _
      $region48: #{tpu_custom_call.1} parent=5 // pred_fallthru
        _
      %p414 = scmp.le.s32.totalorder 1, %s25
      %p415 = scmp.lt.s32.totalorder %s25, 5
      %p416 = pnand %p414, %p415
      %p417 = pneg %p416
      // Predicated region
      $region57: #{tpu_custom_call.1} parent=5 // pred_check
        _
      $region58: #{tpu_custom_call.1} parent=5 // pred_check_branch
        %419 = sbr.rel (%p416) target = $region60
      $region59: #{tpu_custom_call.1} parent=5 // pred_region
        %s420 = ssub.s32 %s25, 1
        %s421 = sand.u32 %s54, 1
        %s422 = scalar_lea.sflag [#allocation4], %s421
        %s423 = sand.u32 %s54, 1
        %s424 = smul.addr %s423, 8
        %s425 = scalar_lea.vmem [#allocation3], %s424
        // Predicated region
        $region61: #{tpu_custom_call.1} parent=59 // pred_check
          %p426 = pneg %p67
        $region62: #{tpu_custom_call.1} parent=59 // pred_check_branch
          %428 = sbr.rel (%p426) target = $region64
        $region63: #{tpu_custom_call.1} parent=59 // pred_region
          %429 = dma.done %s422, 128
        $region64: #{tpu_custom_call.1} parent=59 // pred_fallthru
          _
        // Predicated region
        $region65: #{tpu_custom_call.1} parent=59 // pred_check
          %p430 = pneg %p88
        $region66: #{tpu_custom_call.1} parent=59 // pred_check_branch
          %432 = sbr.rel (%p430) target = $region68
        $region67: #{tpu_custom_call.1} parent=59 // pred_region
          %433 = dma.done [#allocation7], 2048
        $region68: #{tpu_custom_call.1} parent=59 // pred_fallthru
          _
        // Predicated region
        $region69: #{tpu_custom_call.1} parent=59 // pred_check
          %p434 = pneg %p109
        $region70: #{tpu_custom_call.1} parent=59 // pred_check_branch
          %436 = sbr.rel (%p434) target = $region72
        $region71: #{tpu_custom_call.1} parent=59 // pred_region
          %437 = dma.done [#allocation7], 16
        $region72: #{tpu_custom_call.1} parent=59 // pred_fallthru
          _
        // Predicated region
        $region73: #{tpu_custom_call.1} parent=59 // pred_check
          %p438 = pneg %p130
        $region74: #{tpu_custom_call.1} parent=59 // pred_check_branch
          %440 = sbr.rel (%p438) target = $region76
        $region75: #{tpu_custom_call.1} parent=59 // pred_region
          %441 = dma.done [#allocation10], 2048
        $region76: #{tpu_custom_call.1} parent=59 // pred_fallthru
          _
        // Predicated region
        $region77: #{tpu_custom_call.1} parent=59 // pred_check
          %p442 = pneg %p151
        $region78: #{tpu_custom_call.1} parent=59 // pred_check_branch
          %444 = sbr.rel (%p442) target = $region80
        $region79: #{tpu_custom_call.1} parent=59 // pred_region
          %445 = dma.done [#allocation10], 8192
        $region80: #{tpu_custom_call.1} parent=59 // pred_fallthru
          _
        // Predicated region
        $region81: #{tpu_custom_call.1} parent=59 // pred_check
          %p446 = pneg %p193
        $region82: #{tpu_custom_call.1} parent=59 // pred_check_branch
          %448 = sbr.rel (%p446) target = $region84
        $region83: #{tpu_custom_call.1} parent=59 // pred_region
          %449 = dma.done [#allocation13], 2048
        $region84: #{tpu_custom_call.1} parent=59 // pred_fallthru
          _
        // Predicated region
        $region85: #{tpu_custom_call.1} parent=59 // pred_check
          %p450 = pneg %p214
        $region86: #{tpu_custom_call.1} parent=59 // pred_check_branch
          %452 = sbr.rel (%p450) target = $region88
        $region87: #{tpu_custom_call.1} parent=59 // pred_region
          %453 = dma.done [#allocation13], 8192
        $region88: #{tpu_custom_call.1} parent=59 // pred_fallthru
          _
        %s454 = sand.u32 %s54, 1
        %s455 = scalar_lea.sflag [#allocation4], %s454
        %s456 = sand.u32 %s54, 1
        %s457 = smul.addr %s456, 8
        %s458 = scalar_lea.vmem [#allocation3], %s457
        %p459 = pneg %p67
        %p460 = pneg %p64
        %p461 = pneg %p88
        %p462 = pneg %p85
        %p463 = pneg %p109
        %p464 = pneg %p106
        %p465 = pneg %p130
        %p466 = pneg %p127
        %p467 = pneg %p151
        %p468 = pneg %p148
        %p469 = pneg %p172
        %p470 = pneg %p169
        %p471 = pneg %p193
        %p472 = pneg %p190
        %p473 = pneg %p214
        %p474 = pneg %p211
        %p475 = pneg %p235
        %p476 = pneg %p232
        %p477 = scmp.lt.s32.totalorder %s34, 1
        %s478 = scalar_select %p477, %s34, 1
        %s479 = scalar_lea.vmem %s9, %s478
        %p480 = pneg %p261
        %p481 = pneg %p258
        %p482 = pneg %p287
        %p483 = pneg %p284
        %s484 = sand.u32 %s274, 1
        %s485 = scalar_lea.sflag [#allocation5], %s484
        %s486 = sand.u32 %s274, 1
        %s487 = scalar_lea.vmem [#allocation15], %s486
        %s488 = smul.u32 %s34, 2
        %s489 = sadd.s32 %s488, %s35
        %p490 = scmp.lt.s32.totalorder %s34, 1
        %s491 = scalar_select %p490, %s34, 1
        %s492 = scalar_lea.vmem %s9, %s491
        %p493 = scmp.eq.s32.totalorder %s35, 0
        // Predicated region
        $region89: #{tpu_custom_call.1} parent=59 // pred_check
          %p494 = pneg %p493
        $region90: #{tpu_custom_call.1} parent=59 // pred_check_branch
          %496 = sbr.rel (%p494) target = $region92
        $region91: #{tpu_custom_call.1} parent=59 // pred_region
          %497 = vst [vmem:[#allocation2] sm:$0x1] 0.0
        $region92: #{tpu_custom_call.1} parent=59 // pred_fallthru
          _
        %v498 = vld [vmem:[%s425] sm:$0xff]
        %v499 = vld [vmem:[#allocation6] sm:$0xff]
        %v500 = vld [vmem:[#allocation6 + $0x8] sm:$0xff]
        %v501 = vld [vmem:[#allocation6 + $0x10] sm:$0xff]
        %v502 = vld [vmem:[#allocation6 + $0x18] sm:$0xff]
        %v503 = vld [vmem:[#allocation6 + $0x20] sm:$0xff]
        %v504 = vld [vmem:[#allocation6 + $0x28] sm:$0xff]
        %v505 = vld [vmem:[#allocation6 + $0x30] sm:$0xff]
        %v506 = vld [vmem:[#allocation6 + $0x38] sm:$0xff]
        %v507 = vld [vmem:[#allocation6 + $0x40] sm:$0xff]
        %v508 = vld [vmem:[#allocation6 + $0x48] sm:$0xff]
        %v509 = vld [vmem:[#allocation6 + $0x50] sm:$0xff]
        %v510 = vld [vmem:[#allocation6 + $0x58] sm:$0xff]
        %v511 = vld [vmem:[#allocation6 + $0x60] sm:$0xff]
        %v512 = vld [vmem:[#allocation6 + $0x68] sm:$0xff]
        %v513 = vld [vmem:[#allocation6 + $0x70] sm:$0xff]
        %v514 = vld [vmem:[#allocation6 + $0x78] sm:$0xff]
        %v515 = vld [vmem:[#allocation8] sm:$0x1]
        %v517 = vlaneseq
        %v518 = vshrl.u32 %v517, 7
        %v519 = vsub.s32 0, %v518
        %v520 = vrot.slane %v515, %v519
        %522 = vmatprep.subr.mxu0 0.0
        %523 = vmatpush1.msra.mxu0 %v514
        %524 = vmatprep.subr.mxu0 0.0
        %525 = vmatpush1.msra.mxu0 %v513
        %526 = vmatprep.subr.mxu0 0.0
        %527 = vmatpush1.msra.mxu0 %v512
        %528 = vmatprep.subr.mxu0 0.0
        %529 = vmatpush1.msra.mxu0 %v511
        %530 = vmatprep.subr.mxu0 0.0
        %531 = vmatpush1.msra.mxu0 %v510
        %532 = vmatprep.subr.mxu0 0.0
        %533 = vmatpush1.msra.mxu0 %v509
        %534 = vmatprep.subr.mxu0 0.0
        %535 = vmatpush1.msra.mxu0 %v508
        %536 = vmatprep.subr.mxu0 0.0
        %537 = vmatpush1.msra.mxu0 %v507
        %538 = vmatprep.subr.mxu0 0.0
        %539 = vmatpush1.msra.mxu0 %v506
        %540 = vmatprep.subr.mxu0 0.0
        %541 = vmatpush1.msra.mxu0 %v505
        %542 = vmatprep.subr.mxu0 0.0
        %543 = vmatpush1.msra.mxu0 %v504
        %544 = vmatprep.subr.mxu0 0.0
        %545 = vmatpush1.msra.mxu0 %v503
        %546 = vmatprep.subr.mxu0 0.0
        %547 = vmatpush1.msra.mxu0 %v502
        %548 = vmatprep.subr.mxu0 0.0
        %549 = vmatpush1.msra.mxu0 %v501
        %550 = vmatprep.subr.mxu0 0.0
        %551 = vmatpush1.msra.mxu0 %v500
        %552 = vmatprep.subr.mxu0 0.0
        %553 = vmatpush1.msra.mxu0 %v499
        %554 = vmatprep.subr.mxu0 0.0
        %555 = vmatpush2.msra.mxu0 0.0
        %556 = vmatprep.subr.mxu0 0.0
        %557 = vmatpush2.msra.mxu0 0.0
        %558 = vmatprep.subr.mxu0 0.0
        %559 = vmatpush2.msra.mxu0 0.0
        %560 = vmatprep.subr.mxu0 0.0
        %561 = vmatpush2.msra.mxu0 0.0
        %562 = vmatprep.subr.mxu0 0.0
        %563 = vmatpush2.msra.mxu0 0.0
        %564 = vmatprep.subr.mxu0 0.0
        %565 = vmatpush2.msra.mxu0 0.0
        %566 = vmatprep.subr.mxu0 0.0
        %567 = vmatpush2.msra.mxu0 0.0
        %568 = vmatprep.subr.mxu0 0.0
        %569 = vmatpush2.msra.mxu0 0.0
        %570 = vmatprep.subr.mxu0 0.0
        %571 = vmatpush2.msra.mxu0 0.0
        %572 = vmatprep.subr.mxu0 0.0
        %573 = vmatpush2.msra.mxu0 0.0
        %574 = vmatprep.subr.mxu0 0.0
        %575 = vmatpush2.msra.mxu0 0.0
        %576 = vmatprep.subr.mxu0 0.0
        %577 = vmatpush2.msra.mxu0 0.0
        %578 = vmatprep.subr.mxu0 0.0
        %579 = vmatpush2.msra.mxu0 0.0
        %580 = vmatprep.subr.mxu0 0.0
        %581 = vmatpush2.msra.mxu0 0.0
        %582 = vmatprep.subr.mxu0 0.0
        %583 = vmatpush2.msra.mxu0 0.0
        %584 = vmatprep.subr.mxu0 0.0
        %585 = vmatpush2.msra.mxu0 0.0
        %586 = vmatprep.mubr.f32.mxu0 0.0
        %587 = vmatmul.mubr.f32.gmra.mxu0 %v498
        %v588 = vpop.f32.mrf.mxu0
        %v589 = vadd.f32 %v520, %v588
        %v590 = vpop.f32.mrf.mxu0
        %591 = vdwg.mxu0
        %v592 = vld [vmem:[#allocation9] sm:$0xff]
        %v593 = vld [vmem:[#allocation9 + $0x8] sm:$0xff]
        %v594 = vld [vmem:[#allocation9 + $0x10] sm:$0xff]
        %v595 = vld [vmem:[#allocation9 + $0x18] sm:$0xff]
        %v596 = vld [vmem:[#allocation9 + $0x20] sm:$0xff]
        %v597 = vld [vmem:[#allocation9 + $0x28] sm:$0xff]
        %v598 = vld [vmem:[#allocation9 + $0x30] sm:$0xff]
        %v599 = vld [vmem:[#allocation9 + $0x38] sm:$0xff]
        %v600 = vld [vmem:[#allocation9 + $0x40] sm:$0xff]
        %v601 = vld [vmem:[#allocation9 + $0x48] sm:$0xff]
        %v602 = vld [vmem:[#allocation9 + $0x50] sm:$0xff]
        %v603 = vld [vmem:[#allocation9 + $0x58] sm:$0xff]
        %v604 = vld [vmem:[#allocation9 + $0x60] sm:$0xff]
        %v605 = vld [vmem:[#allocation9 + $0x68] sm:$0xff]
        %v606 = vld [vmem:[#allocation9 + $0x70] sm:$0xff]
        %v607 = vld [vmem:[#allocation9 + $0x78] sm:$0xff]
        %v608 = vld [vmem:[#allocation11] sm:$0xff]
        %v609 = vld [vmem:[#allocation11 + $0x8] sm:$0xff]
        %v610 = vld [vmem:[#allocation11 + $0x10] sm:$0xff]
        %v611 = vld [vmem:[#allocation11 + $0x18] sm:$0xff]
        %v612 = vld [vmem:[#allocation11 + $0x20] sm:$0xff]
        %v613 = vld [vmem:[#allocation11 + $0x28] sm:$0xff]
        %v614 = vld [vmem:[#allocation11 + $0x30] sm:$0xff]
        %v615 = vld [vmem:[#allocation11 + $0x38] sm:$0xff]
        %v616 = vld [vmem:[#allocation11 + $0x40] sm:$0xff]
        %v617 = vld [vmem:[#allocation11 + $0x48] sm:$0xff]
        %v618 = vld [vmem:[#allocation11 + $0x50] sm:$0xff]
        %v619 = vld [vmem:[#allocation11 + $0x58] sm:$0xff]
        %v620 = vld [vmem:[#allocation11 + $0x60] sm:$0xff]
        %v621 = vld [vmem:[#allocation11 + $0x68] sm:$0xff]
        %v622 = vld [vmem:[#allocation11 + $0x70] sm:$0xff]
        %v623 = vld [vmem:[#allocation11 + $0x78] sm:$0xff]
        %v624 = vld [vmem:[#allocation11 + $0x80] sm:$0xff]
        %v625 = vld [vmem:[#allocation11 + $0x88] sm:$0xff]
        %v626 = vld [vmem:[#allocation11 + $0x90] sm:$0xff]
        %v627 = vld [vmem:[#allocation11 + $0x98] sm:$0xff]
        %v628 = vld [vmem:[#allocation11 + $0xa0] sm:$0xff]
        %v629 = vld [vmem:[#allocation11 + $0xa8] sm:$0xff]
        %v630 = vld [vmem:[#allocation11 + $0xb0] sm:$0xff]
        %v631 = vld [vmem:[#allocation11 + $0xb8] sm:$0xff]
        %v632 = vld [vmem:[#allocation11 + $0xc0] sm:$0xff]
        %v633 = vld [vmem:[#allocation11 + $0xc8] sm:$0xff]
        %v634 = vld [vmem:[#allocation11 + $0xd0] sm:$0xff]
        %v635 = vld [vmem:[#allocation11 + $0xd8] sm:$0xff]
        %v636 = vld [vmem:[#allocation11 + $0xe0] sm:$0xff]
        %v637 = vld [vmem:[#allocation11 + $0xe8] sm:$0xff]
        %v638 = vld [vmem:[#allocation11 + $0xf0] sm:$0xff]
        %v639 = vld [vmem:[#allocation11 + $0xf8] sm:$0xff]
        %v640 = vld [vmem:[#allocation11 + $0x100] sm:$0xff]
        %v641 = vld [vmem:[#allocation11 + $0x108] sm:$0xff]
        %v642 = vld [vmem:[#allocation11 + $0x110] sm:$0xff]
        %v643 = vld [vmem:[#allocation11 + $0x118] sm:$0xff]
        %v644 = vld [vmem:[#allocation11 + $0x120] sm:$0xff]
        %v645 = vld [vmem:[#allocation11 + $0x128] sm:$0xff]
        %v646 = vld [vmem:[#allocation11 + $0x130] sm:$0xff]
        %v647 = vld [vmem:[#allocation11 + $0x138] sm:$0xff]
        %v648 = vld [vmem:[#allocation11 + $0x140] sm:$0xff]
        %v649 = vld [vmem:[#allocation11 + $0x148] sm:$0xff]
        %v650 = vld [vmem:[#allocation11 + $0x150] sm:$0xff]
        %v651 = vld [vmem:[#allocation11 + $0x158] sm:$0xff]
        %v652 = vld [vmem:[#allocation11 + $0x160] sm:$0xff]
        %v653 = vld [vmem:[#allocation11 + $0x168] sm:$0xff]
        %v654 = vld [vmem:[#allocation11 + $0x170] sm:$0xff]
        %v655 = vld [vmem:[#allocation11 + $0x178] sm:$0xff]
        %v656 = vld [vmem:[#allocation11 + $0x180] sm:$0xff]
        %v657 = vld [vmem:[#allocation11 + $0x188] sm:$0xff]
        %v658 = vld [vmem:[#allocation11 + $0x190] sm:$0xff]
        %v659 = vld [vmem:[#allocation11 + $0x198] sm:$0xff]
        %v660 = vld [vmem:[#allocation11 + $0x1a0] sm:$0xff]
        %v661 = vld [vmem:[#allocation11 + $0x1a8] sm:$0xff]
        %v662 = vld [vmem:[#allocation11 + $0x1b0] sm:$0xff]
        %v663 = vld [vmem:[#allocation11 + $0x1b8] sm:$0xff]
        %v664 = vld [vmem:[#allocation11 + $0x1c0] sm:$0xff]
        %v665 = vld [vmem:[#allocation11 + $0x1c8] sm:$0xff]
        %v666 = vld [vmem:[#allocation11 + $0x1d0] sm:$0xff]
        %v667 = vld [vmem:[#allocation11 + $0x1d8] sm:$0xff]
        %v668 = vld [vmem:[#allocation11 + $0x1e0] sm:$0xff]
        %v669 = vld [vmem:[#allocation11 + $0x1e8] sm:$0xff]
        %v670 = vld [vmem:[#allocation11 + $0x1f0] sm:$0xff]
        %v671 = vld [vmem:[#allocation11 + $0x1f8] sm:$0xff]
        %v672 = vld [vmem:[%s5] sm:$0xf]
        %673 = vmatprep.subr.mxu0 0.0
        %674 = vmatpush1.msra.mxu0 %v607
        %675 = vmatprep.subr.mxu0 0.0
        %676 = vmatpush1.msra.mxu0 %v606
        %677 = vmatprep.subr.mxu0 0.0
        %678 = vmatpush1.msra.mxu0 %v605
        %679 = vmatprep.subr.mxu0 0.0
        %680 = vmatpush1.msra.mxu0 %v604
        %681 = vmatprep.subr.mxu0 0.0
        %682 = vmatpush1.msra.mxu0 %v603
        %683 = vmatprep.subr.mxu0 0.0
        %684 = vmatpush1.msra.mxu0 %v602
        %685 = vmatprep.subr.mxu0 0.0
        %686 = vmatpush1.msra.mxu0 %v601
        %687 = vmatprep.subr.mxu0 0.0
        %688 = vmatpush1.msra.mxu0 %v600
        %689 = vmatprep.subr.mxu0 0.0
        %690 = vmatpush1.msra.mxu0 %v599
        %691 = vmatprep.subr.mxu0 0.0
        %692 = vmatpush1.msra.mxu0 %v598
        %693 = vmatprep.subr.mxu0 0.0
        %694 = vmatpush1.msra.mxu0 %v597
        %695 = vmatprep.subr.mxu0 0.0
        %696 = vmatpush1.msra.mxu0 %v596
        %697 = vmatprep.subr.mxu0 0.0
        %698 = vmatpush1.msra.mxu0 %v595
        %699 = vmatprep.subr.mxu0 0.0
        %700 = vmatpush1.msra.mxu0 %v594
        %701 = vmatprep.subr.mxu0 0.0
        %702 = vmatpush1.msra.mxu0 %v593
        %703 = vmatprep.subr.mxu0 0.0
        %704 = vmatpush1.msra.mxu0 %v592
        %705 = vmatprep.subr.mxu0 0.0
        %706 = vmatpush2.msra.mxu0 0.0
        %707 = vmatprep.subr.mxu0 0.0
        %708 = vmatpush2.msra.mxu0 0.0
        %709 = vmatprep.subr.mxu0 0.0
        %710 = vmatpush2.msra.mxu0 0.0
        %711 = vmatprep.subr.mxu0 0.0
        %712 = vmatpush2.msra.mxu0 0.0
        %713 = vmatprep.subr.mxu0 0.0
        %714 = vmatpush2.msra.mxu0 0.0
        %715 = vmatprep.subr.mxu0 0.0
        %716 = vmatpush2.msra.mxu0 0.0
        %717 = vmatprep.subr.mxu0 0.0
        %718 = vmatpush2.msra.mxu0 0.0
        %719 = vmatprep.subr.mxu0 0.0
        %720 = vmatpush2.msra.mxu0 0.0
        %721 = vmatprep.subr.mxu0 0.0
        %722 = vmatpush2.msra.mxu0 0.0
        %723 = vmatprep.subr.mxu0 0.0
        %724 = vmatpush2.msra.mxu0 0.0
        %725 = vmatprep.subr.mxu0 0.0
        %726 = vmatpush2.msra.mxu0 0.0
        %727 = vmatprep.subr.mxu0 0.0
        %728 = vmatpush2.msra.mxu0 0.0
        %729 = vmatprep.subr.mxu0 0.0
        %730 = vmatpush2.msra.mxu0 0.0
        %731 = vmatprep.subr.mxu0 0.0
        %732 = vmatpush2.msra.mxu0 0.0
        %733 = vmatprep.subr.mxu0 0.0
        %734 = vmatpush2.msra.mxu0 0.0
        %735 = vmatprep.subr.mxu0 0.0
        %736 = vmatpush2.msra.mxu0 0.0
        %737 = vmatprep.mubr.f32.mxu0 0.0
        %738 = vmatmul.mubr.f32.gmra.mxu0 %v589
        %v739 = vpop.f32.mrf.mxu0
        %v740 = vadd.f32 0.0, %v739
        %v741 = vpop.f32.mrf.mxu0
        %742 = vdwg.mxu0
        %v743 = vlaneseq
        %v744 = vand.u32 %v743, 127
        %vm745 = vcmp.lt.s32.totalorder %v744, 4
        %v746 = vsel %vm745, %v740, -inf
        %747 = vmax.xlane.f32.xlu0 %v746
        %v748 = vpop.xlane.xlu0 %747
        %v749 = vsub.f32 %v746, %v748
        %v750 = vmul.f32 %v749, 1.442695
        %v751 = vpow.pop %v750
        %752 = vadd.xlane.f32.xlu0 %v751
        %v753 = vpop.xlane.xlu0 %752
        %v754 = vrcp.pop %v753
        %v755 = vmul.f32 %v751, %v754
        %vm756 = vcmp.ge.f32.partialorder %v746, %v748
        %v757 = vsel %vm756, %v744, 4
        %v758 = vand.u32 %v757, 65535
        %v759 = vshra.s32 %v757, 16
        %v760 = vcvt.s32.f32 %v758
        %v761 = vcvt.s32.f32 %v759
        %762 = vmin.xlane.f32.xlu0 %v761
        %v763 = vpop.xlane.xlu0 %762
        %vm764 = vcmp.eq.f32.partialorder %v761, %v763
        %v765 = vsel %vm764, %v760, inf
        %766 = vmin.xlane.f32.xlu0 %v765
        %v767 = vpop.xlane.xlu0 %766
        %v768 = vcvt.f32.s32 %v767
        %v769 = vcvt.f32.s32 %v763
        %v770 = vshll.u32 %v769, 16
        %v771 = vadd.s32 %v770, %v768
        %vm772 = vcmp.eq.s32.totalorder %v771, 0
        %v773 = vsel %vm772, 1, 0
        %v774 = vcvt.s32.f32 %v773
        %v775 = vmul.f32 %v774, %v755
        %v776 = vlaneseq
        %v777 = vshrl.u32 %v776, 7
        %v778 = vsub.s32 0, %v777
        %v779 = vrot.slane %v672, %v778
        %780 = vmatprep.subr.mxu0 0.0
        %781 = vmatpush1.msra.mxu0 %v623
        %782 = vmatprep.subr.mxu0 0.0
        %783 = vmatpush1.msra.mxu0 %v622
        %784 = vmatprep.subr.mxu0 0.0
        %785 = vmatpush1.msra.mxu0 %v621
        %786 = vmatprep.subr.mxu0 0.0
        %787 = vmatpush1.msra.mxu0 %v620
        %788 = vmatprep.subr.mxu0 0.0
        %789 = vmatpush1.msra.mxu0 %v619
        %790 = vmatprep.subr.mxu0 0.0
        %791 = vmatpush1.msra.mxu0 %v618
        %792 = vmatprep.subr.mxu0 0.0
        %793 = vmatpush1.msra.mxu0 %v617
        %794 = vmatprep.subr.mxu0 0.0
        %795 = vmatpush1.msra.mxu0 %v616
        %796 = vmatprep.subr.mxu0 0.0
        %797 = vmatpush1.msra.mxu0 %v615
        %798 = vmatprep.subr.mxu0 0.0
        %799 = vmatpush1.msra.mxu0 %v614
        %800 = vmatprep.subr.mxu0 0.0
        %801 = vmatpush1.msra.mxu0 %v613
        %802 = vmatprep.subr.mxu0 0.0
        %803 = vmatpush1.msra.mxu0 %v612
        %804 = vmatprep.subr.mxu0 0.0
        %805 = vmatpush1.msra.mxu0 %v611
        %806 = vmatprep.subr.mxu0 0.0
        %807 = vmatpush1.msra.mxu0 %v610
        %808 = vmatprep.subr.mxu0 0.0
        %809 = vmatpush1.msra.mxu0 %v609
        %810 = vmatprep.subr.mxu0 0.0
        %811 = vmatpush1.msra.mxu0 %v608
        %812 = vmatprep.subr.mxu0 0.0
        %813 = vmatpush2.msra.mxu0 0.0
        %814 = vmatprep.subr.mxu0 0.0
        %815 = vmatpush2.msra.mxu0 0.0
        %816 = vmatprep.subr.mxu0 0.0
        %817 = vmatpush2.msra.mxu0 0.0
        %818 = vmatprep.subr.mxu0 0.0
        %819 = vmatpush2.msra.mxu0 0.0
        %820 = vmatprep.subr.mxu0 0.0
        %821 = vmatpush2.msra.mxu0 0.0
        %822 = vmatprep.subr.mxu0 0.0
        %823 = vmatpush2.msra.mxu0 0.0
        %824 = vmatprep.subr.mxu0 0.0
        %825 = vmatpush2.msra.mxu0 0.0
        %826 = vmatprep.subr.mxu0 0.0
        %827 = vmatpush2.msra.mxu0 0.0
        %828 = vmatprep.subr.mxu0 0.0
        %829 = vmatpush2.msra.mxu0 0.0
        %830 = vmatprep.subr.mxu0 0.0
        %831 = vmatpush2.msra.mxu0 0.0
        %832 = vmatprep.subr.mxu0 0.0
        %833 = vmatpush2.msra.mxu0 0.0
        %834 = vmatprep.subr.mxu0 0.0
        %835 = vmatpush2.msra.mxu0 0.0
        %836 = vmatprep.subr.mxu0 0.0
        %837 = vmatpush2.msra.mxu0 0.0
        %838 = vmatprep.subr.mxu0 0.0
        %839 = vmatpush2.msra.mxu0 0.0
        %840 = vmatprep.subr.mxu0 0.0
        %841 = vmatpush2.msra.mxu0 0.0
        %842 = vmatprep.subr.mxu0 0.0
        %843 = vmatpush2.msra.mxu0 0.0
        %844 = vmatprep.mubr.f32.mxu0 0.0
        %845 = vmatmul.mubr.f32.gmra.mxu0 %v589
        %v846 = vpop.f32.mrf.mxu0
        %v847 = vadd.f32 %v779, %v846
        %v848 = vpop.f32.mrf.mxu0
        %849 = vdwg.mxu0
        %851 = vset.pattern.permute.xlu0 0
        %852 = vperm.xlu0 %851, %v775
        %v853 = vpop.permute.xlu0 %852
        %v855 = vmul.f32 %v853, %v847
        %v856 = vadd.f32 %v855, 0.0
        %vm857 = vcmp.eq.s32.totalorder %v771, 1
        %v858 = vsel %vm857, 1, 0
        %v859 = vcvt.s32.f32 %v858
        %v860 = vmul.f32 %v859, %v755
        %v861 = vlaneseq
        %v862 = vshrl.u32 %v861, 7
        %v863 = vsub.s32 1, %v862
        %v864 = vrot.slane %v672, %v863
        %865 = vmatprep.subr.mxu0 0.0
        %866 = vmatpush1.msra.mxu0 %v639
        %867 = vmatprep.subr.mxu0 0.0
        %868 = vmatpush1.msra.mxu0 %v638
        %869 = vmatprep.subr.mxu0 0.0
        %870 = vmatpush1.msra.mxu0 %v637
        %871 = vmatprep.subr.mxu0 0.0
        %872 = vmatpush1.msra.mxu0 %v636
        %873 = vmatprep.subr.mxu0 0.0
        %874 = vmatpush1.msra.mxu0 %v635
        %875 = vmatprep.subr.mxu0 0.0
        %876 = vmatpush1.msra.mxu0 %v634
        %877 = vmatprep.subr.mxu0 0.0
        %878 = vmatpush1.msra.mxu0 %v633
        %879 = vmatprep.subr.mxu0 0.0
        %880 = vmatpush1.msra.mxu0 %v632
        %881 = vmatprep.subr.mxu0 0.0
        %882 = vmatpush1.msra.mxu0 %v631
        %883 = vmatprep.subr.mxu0 0.0
        %884 = vmatpush1.msra.mxu0 %v630
        %885 = vmatprep.subr.mxu0 0.0
        %886 = vmatpush1.msra.mxu0 %v629
        %887 = vmatprep.subr.mxu0 0.0
        %888 = vmatpush1.msra.mxu0 %v628
        %889 = vmatprep.subr.mxu0 0.0
        %890 = vmatpush1.msra.mxu0 %v627
        %891 = vmatprep.subr.mxu0 0.0
        %892 = vmatpush1.msra.mxu0 %v626
        %893 = vmatprep.subr.mxu0 0.0
        %894 = vmatpush1.msra.mxu0 %v625
        %895 = vmatprep.subr.mxu0 0.0
        %896 = vmatpush1.msra.mxu0 %v624
        %897 = vmatprep.subr.mxu0 0.0
        %898 = vmatpush2.msra.mxu0 0.0
        %899 = vmatprep.subr.mxu0 0.0
        %900 = vmatpush2.msra.mxu0 0.0
        %901 = vmatprep.subr.mxu0 0.0
        %902 = vmatpush2.msra.mxu0 0.0
        %903 = vmatprep.subr.mxu0 0.0
        %904 = vmatpush2.msra.mxu0 0.0
        %905 = vmatprep.subr.mxu0 0.0
        %906 = vmatpush2.msra.mxu0 0.0
        %907 = vmatprep.subr.mxu0 0.0
        %908 = vmatpush2.msra.mxu0 0.0
        %909 = vmatprep.subr.mxu0 0.0
        %910 = vmatpush2.msra.mxu0 0.0
        %911 = vmatprep.subr.mxu0 0.0
        %912 = vmatpush2.msra.mxu0 0.0
        %913 = vmatprep.subr.mxu0 0.0
        %914 = vmatpush2.msra.mxu0 0.0
        %915 = vmatprep.subr.mxu0 0.0
        %916 = vmatpush2.msra.mxu0 0.0
        %917 = vmatprep.subr.mxu0 0.0
        %918 = vmatpush2.msra.mxu0 0.0
        %919 = vmatprep.subr.mxu0 0.0
        %920 = vmatpush2.msra.mxu0 0.0
        %921 = vmatprep.subr.mxu0 0.0
        %922 = vmatpush2.msra.mxu0 0.0
        %923 = vmatprep.subr.mxu0 0.0
        %924 = vmatpush2.msra.mxu0 0.0
        %925 = vmatprep.subr.mxu0 0.0
        %926 = vmatpush2.msra.mxu0 0.0
        %927 = vmatprep.subr.mxu0 0.0
        %928 = vmatpush2.msra.mxu0 0.0
        %929 = vmatprep.mubr.f32.mxu0 0.0
        %930 = vmatmul.mubr.f32.gmra.mxu0 %v589
        %v931 = vpop.f32.mrf.mxu0
        %v932 = vadd.f32 %v864, %v931
        %v933 = vpop.f32.mrf.mxu0
        %934 = vdwg.mxu0
        %936 = vset.pattern.permute.xlu0 1
        %937 = vperm.xlu0 %936, %v860
        %v938 = vpop.permute.xlu0 %937
        %v940 = vmul.f32 %v938, %v932
        %v941 = vadd.f32 %v856, %v940
        %vm942 = vcmp.eq.s32.totalorder %v771, 2
        %v943 = vsel %vm942, 1, 0
        %v944 = vcvt.s32.f32 %v943
        %v945 = vmul.f32 %v944, %v755
        %v946 = vlaneseq
        %v947 = vshrl.u32 %v946, 7
        %v948 = vsub.s32 2, %v947
        %v949 = vrot.slane %v672, %v948
        %950 = vmatprep.subr.mxu0 0.0
        %951 = vmatpush1.msra.mxu0 %v655
        %952 = vmatprep.subr.mxu0 0.0
        %953 = vmatpush1.msra.mxu0 %v654
        %954 = vmatprep.subr.mxu0 0.0
        %955 = vmatpush1.msra.mxu0 %v653
        %956 = vmatprep.subr.mxu0 0.0
        %957 = vmatpush1.msra.mxu0 %v652
        %958 = vmatprep.subr.mxu0 0.0
        %959 = vmatpush1.msra.mxu0 %v651
        %960 = vmatprep.subr.mxu0 0.0
        %961 = vmatpush1.msra.mxu0 %v650
        %962 = vmatprep.subr.mxu0 0.0
        %963 = vmatpush1.msra.mxu0 %v649
        %964 = vmatprep.subr.mxu0 0.0
        %965 = vmatpush1.msra.mxu0 %v648
        %966 = vmatprep.subr.mxu0 0.0
        %967 = vmatpush1.msra.mxu0 %v647
        %968 = vmatprep.subr.mxu0 0.0
        %969 = vmatpush1.msra.mxu0 %v646
        %970 = vmatprep.subr.mxu0 0.0
        %971 = vmatpush1.msra.mxu0 %v645
        %972 = vmatprep.subr.mxu0 0.0
        %973 = vmatpush1.msra.mxu0 %v644
        %974 = vmatprep.subr.mxu0 0.0
        %975 = vmatpush1.msra.mxu0 %v643
        %976 = vmatprep.subr.mxu0 0.0
        %977 = vmatpush1.msra.mxu0 %v642
        %978 = vmatprep.subr.mxu0 0.0
        %979 = vmatpush1.msra.mxu0 %v641
        %980 = vmatprep.subr.mxu0 0.0
        %981 = vmatpush1.msra.mxu0 %v640
        %982 = vmatprep.subr.mxu0 0.0
        %983 = vmatpush2.msra.mxu0 0.0
        %984 = vmatprep.subr.mxu0 0.0
        %985 = vmatpush2.msra.mxu0 0.0
        %986 = vmatprep.subr.mxu0 0.0
        %987 = vmatpush2.msra.mxu0 0.0
        %988 = vmatprep.subr.mxu0 0.0
        %989 = vmatpush2.msra.mxu0 0.0
        %990 = vmatprep.subr.mxu0 0.0
        %991 = vmatpush2.msra.mxu0 0.0
        %992 = vmatprep.subr.mxu0 0.0
        %993 = vmatpush2.msra.mxu0 0.0
        %994 = vmatprep.subr.mxu0 0.0
        %995 = vmatpush2.msra.mxu0 0.0
        %996 = vmatprep.subr.mxu0 0.0
        %997 = vmatpush2.msra.mxu0 0.0
        %998 = vmatprep.subr.mxu0 0.0
        %999 = vmatpush2.msra.mxu0 0.0
        %1000 = vmatprep.subr.mxu0 0.0
        %1001 = vmatpush2.msra.mxu0 0.0
        %1002 = vmatprep.subr.mxu0 0.0
        %1003 = vmatpush2.msra.mxu0 0.0
        %1004 = vmatprep.subr.mxu0 0.0
        %1005 = vmatpush2.msra.mxu0 0.0
        %1006 = vmatprep.subr.mxu0 0.0
        %1007 = vmatpush2.msra.mxu0 0.0
        %1008 = vmatprep.subr.mxu0 0.0
        %1009 = vmatpush2.msra.mxu0 0.0
        %1010 = vmatprep.subr.mxu0 0.0
        %1011 = vmatpush2.msra.mxu0 0.0
        %1012 = vmatprep.subr.mxu0 0.0
        %1013 = vmatpush2.msra.mxu0 0.0
        %1014 = vmatprep.mubr.f32.mxu0 0.0
        %1015 = vmatmul.mubr.f32.gmra.mxu0 %v589
        %v1016 = vpop.f32.mrf.mxu0
        %v1017 = vadd.f32 %v949, %v1016
        %v1018 = vpop.f32.mrf.mxu0
        %1019 = vdwg.mxu0
        %1021 = vset.pattern.permute.xlu0 2
        %1022 = vperm.xlu0 %1021, %v945
        %v1023 = vpop.permute.xlu0 %1022
        %v1025 = vmul.f32 %v1023, %v1017
        %v1026 = vadd.f32 %v941, %v1025
        %vm1027 = vcmp.eq.s32.totalorder %v771, 3
        %v1028 = vsel %vm1027, 1, 0
        %v1029 = vcvt.s32.f32 %v1028
        %v1030 = vmul.f32 %v1029, %v755
        %v1031 = vlaneseq
        %v1032 = vshrl.u32 %v1031, 7
        %v1033 = vsub.s32 3, %v1032
        %v1034 = vrot.slane %v672, %v1033
        %1035 = vmatprep.subr.mxu0 0.0
        %1036 = vmatpush1.msra.mxu0 %v671
        %1037 = vmatprep.subr.mxu0 0.0
        %1038 = vmatpush1.msra.mxu0 %v670
        %1039 = vmatprep.subr.mxu0 0.0
        %1040 = vmatpush1.msra.mxu0 %v669
        %1041 = vmatprep.subr.mxu0 0.0
        %1042 = vmatpush1.msra.mxu0 %v668
        %1043 = vmatprep.subr.mxu0 0.0
        %1044 = vmatpush1.msra.mxu0 %v667
        %1045 = vmatprep.subr.mxu0 0.0
        %1046 = vmatpush1.msra.mxu0 %v666
        %1047 = vmatprep.subr.mxu0 0.0
        %1048 = vmatpush1.msra.mxu0 %v665
        %1049 = vmatprep.subr.mxu0 0.0
        %1050 = vmatpush1.msra.mxu0 %v664
        %1051 = vmatprep.subr.mxu0 0.0
        %1052 = vmatpush1.msra.mxu0 %v663
        %1053 = vmatprep.subr.mxu0 0.0
        %1054 = vmatpush1.msra.mxu0 %v662
        %1055 = vmatprep.subr.mxu0 0.0
        %1056 = vmatpush1.msra.mxu0 %v661
        %1057 = vmatprep.subr.mxu0 0.0
        %1058 = vmatpush1.msra.mxu0 %v660
        %1059 = vmatprep.subr.mxu0 0.0
        %1060 = vmatpush1.msra.mxu0 %v659
        %1061 = vmatprep.subr.mxu0 0.0
        %1062 = vmatpush1.msra.mxu0 %v658
        %1063 = vmatprep.subr.mxu0 0.0
        %1064 = vmatpush1.msra.mxu0 %v657
        %1065 = vmatprep.subr.mxu0 0.0
        %1066 = vmatpush1.msra.mxu0 %v656
        %1067 = vmatprep.subr.mxu0 0.0
        %1068 = vmatpush2.msra.mxu0 0.0
        %1069 = vmatprep.subr.mxu0 0.0
        %1070 = vmatpush2.msra.mxu0 0.0
        %1071 = vmatprep.subr.mxu0 0.0
        %1072 = vmatpush2.msra.mxu0 0.0
        %1073 = vmatprep.subr.mxu0 0.0
        %1074 = vmatpush2.msra.mxu0 0.0
        %1075 = vmatprep.subr.mxu0 0.0
        %1076 = vmatpush2.msra.mxu0 0.0
        %1077 = vmatprep.subr.mxu0 0.0
        %1078 = vmatpush2.msra.mxu0 0.0
        %1079 = vmatprep.subr.mxu0 0.0
        %1080 = vmatpush2.msra.mxu0 0.0
        %1081 = vmatprep.subr.mxu0 0.0
        %1082 = vmatpush2.msra.mxu0 0.0
        %1083 = vmatprep.subr.mxu0 0.0
        %1084 = vmatpush2.msra.mxu0 0.0
        %1085 = vmatprep.subr.mxu0 0.0
        %1086 = vmatpush2.msra.mxu0 0.0
        %1087 = vmatprep.subr.mxu0 0.0
        %1088 = vmatpush2.msra.mxu0 0.0
        %1089 = vmatprep.subr.mxu0 0.0
        %1090 = vmatpush2.msra.mxu0 0.0
        %1091 = vmatprep.subr.mxu0 0.0
        %1092 = vmatpush2.msra.mxu0 0.0
        %1093 = vmatprep.subr.mxu0 0.0
        %1094 = vmatpush2.msra.mxu0 0.0
        %1095 = vmatprep.subr.mxu0 0.0
        %1096 = vmatpush2.msra.mxu0 0.0
        %1097 = vmatprep.subr.mxu0 0.0
        %1098 = vmatpush2.msra.mxu0 0.0
        %1099 = vmatprep.mubr.f32.mxu0 0.0
        %1100 = vmatmul.mubr.f32.gmra.mxu0 %v589
        %v1101 = vpop.f32.mrf.mxu0
        %v1102 = vadd.f32 %v1034, %v1101
        %v1103 = vpop.f32.mrf.mxu0
        %1104 = vdwg.mxu0
        %1106 = vset.pattern.permute.xlu0 3
        %1107 = vperm.xlu0 %1106, %v1030
        %v1108 = vpop.permute.xlu0 %1107
        %v1110 = vmul.f32 %v1108, %v1102
        %v1111 = vadd.f32 %v1026, %v1110
        %v1112 = vld [vmem:[#allocation12] sm:$0xff]
        %v1113 = vld [vmem:[#allocation12 + $0x8] sm:$0xff]
        %v1114 = vld [vmem:[#allocation12 + $0x10] sm:$0xff]
        %v1115 = vld [vmem:[#allocation12 + $0x18] sm:$0xff]
        %v1116 = vld [vmem:[#allocation12 + $0x20] sm:$0xff]
        %v1117 = vld [vmem:[#allocation12 + $0x28] sm:$0xff]
        %v1118 = vld [vmem:[#allocation12 + $0x30] sm:$0xff]
        %v1119 = vld [vmem:[#allocation12 + $0x38] sm:$0xff]
        %v1120 = vld [vmem:[#allocation12 + $0x40] sm:$0xff]
        %v1121 = vld [vmem:[#allocation12 + $0x48] sm:$0xff]
        %v1122 = vld [vmem:[#allocation12 + $0x50] sm:$0xff]
        %v1123 = vld [vmem:[#allocation12 + $0x58] sm:$0xff]
        %v1124 = vld [vmem:[#allocation12 + $0x60] sm:$0xff]
        %v1125 = vld [vmem:[#allocation12 + $0x68] sm:$0xff]
        %v1126 = vld [vmem:[#allocation12 + $0x70] sm:$0xff]
        %v1127 = vld [vmem:[#allocation12 + $0x78] sm:$0xff]
        %v1128 = vld [vmem:[#allocation14] sm:$0xff]
        %v1129 = vld [vmem:[#allocation14 + $0x8] sm:$0xff]
        %v1130 = vld [vmem:[#allocation14 + $0x10] sm:$0xff]
        %v1131 = vld [vmem:[#allocation14 + $0x18] sm:$0xff]
        %v1132 = vld [vmem:[#allocation14 + $0x20] sm:$0xff]
        %v1133 = vld [vmem:[#allocation14 + $0x28] sm:$0xff]
        %v1134 = vld [vmem:[#allocation14 + $0x30] sm:$0xff]
        %v1135 = vld [vmem:[#allocation14 + $0x38] sm:$0xff]
        %v1136 = vld [vmem:[#allocation14 + $0x40] sm:$0xff]
        %v1137 = vld [vmem:[#allocation14 + $0x48] sm:$0xff]
        %v1138 = vld [vmem:[#allocation14 + $0x50] sm:$0xff]
        %v1139 = vld [vmem:[#allocation14 + $0x58] sm:$0xff]
        %v1140 = vld [vmem:[#allocation14 + $0x60] sm:$0xff]
        %v1141 = vld [vmem:[#allocation14 + $0x68] sm:$0xff]
        %v1142 = vld [vmem:[#allocation14 + $0x70] sm:$0xff]
        %v1143 = vld [vmem:[#allocation14 + $0x78] sm:$0xff]
        %v1144 = vld [vmem:[#allocation14 + $0x80] sm:$0xff]
        %v1145 = vld [vmem:[#allocation14 + $0x88] sm:$0xff]
        %v1146 = vld [vmem:[#allocation14 + $0x90] sm:$0xff]
        %v1147 = vld [vmem:[#allocation14 + $0x98] sm:$0xff]
        %v1148 = vld [vmem:[#allocation14 + $0xa0] sm:$0xff]
        %v1149 = vld [vmem:[#allocation14 + $0xa8] sm:$0xff]
        %v1150 = vld [vmem:[#allocation14 + $0xb0] sm:$0xff]
        %v1151 = vld [vmem:[#allocation14 + $0xb8] sm:$0xff]
        %v1152 = vld [vmem:[#allocation14 + $0xc0] sm:$0xff]
        %v1153 = vld [vmem:[#allocation14 + $0xc8] sm:$0xff]
        %v1154 = vld [vmem:[#allocation14 + $0xd0] sm:$0xff]
        %v1155 = vld [vmem:[#allocation14 + $0xd8] sm:$0xff]
        %v1156 = vld [vmem:[#allocation14 + $0xe0] sm:$0xff]
        %v1157 = vld [vmem:[#allocation14 + $0xe8] sm:$0xff]
        %v1158 = vld [vmem:[#allocation14 + $0xf0] sm:$0xff]
        %v1159 = vld [vmem:[#allocation14 + $0xf8] sm:$0xff]
        %v1160 = vld [vmem:[#allocation14 + $0x100] sm:$0xff]
        %v1161 = vld [vmem:[#allocation14 + $0x108] sm:$0xff]
        %v1162 = vld [vmem:[#allocation14 + $0x110] sm:$0xff]
        %v1163 = vld [vmem:[#allocation14 + $0x118] sm:$0xff]
        %v1164 = vld [vmem:[#allocation14 + $0x120] sm:$0xff]
        %v1165 = vld [vmem:[#allocation14 + $0x128] sm:$0xff]
        %v1166 = vld [vmem:[#allocation14 + $0x130] sm:$0xff]
        %v1167 = vld [vmem:[#allocation14 + $0x138] sm:$0xff]
        %v1168 = vld [vmem:[#allocation14 + $0x140] sm:$0xff]
        %v1169 = vld [vmem:[#allocation14 + $0x148] sm:$0xff]
        %v1170 = vld [vmem:[#allocation14 + $0x150] sm:$0xff]
        %v1171 = vld [vmem:[#allocation14 + $0x158] sm:$0xff]
        %v1172 = vld [vmem:[#allocation14 + $0x160] sm:$0xff]
        %v1173 = vld [vmem:[#allocation14 + $0x168] sm:$0xff]
        %v1174 = vld [vmem:[#allocation14 + $0x170] sm:$0xff]
        %v1175 = vld [vmem:[#allocation14 + $0x178] sm:$0xff]
        %v1176 = vld [vmem:[#allocation14 + $0x180] sm:$0xff]
        %v1177 = vld [vmem:[#allocation14 + $0x188] sm:$0xff]
        %v1178 = vld [vmem:[#allocation14 + $0x190] sm:$0xff]
        %v1179 = vld [vmem:[#allocation14 + $0x198] sm:$0xff]
        %v1180 = vld [vmem:[#allocation14 + $0x1a0] sm:$0xff]
        %v1181 = vld [vmem:[#allocation14 + $0x1a8] sm:$0xff]
        %v1182 = vld [vmem:[#allocation14 + $0x1b0] sm:$0xff]
        %v1183 = vld [vmem:[#allocation14 + $0x1b8] sm:$0xff]
        %v1184 = vld [vmem:[#allocation14 + $0x1c0] sm:$0xff]
        %v1185 = vld [vmem:[#allocation14 + $0x1c8] sm:$0xff]
        %v1186 = vld [vmem:[#allocation14 + $0x1d0] sm:$0xff]
        %v1187 = vld [vmem:[#allocation14 + $0x1d8] sm:$0xff]
        %v1188 = vld [vmem:[#allocation14 + $0x1e0] sm:$0xff]
        %v1189 = vld [vmem:[#allocation14 + $0x1e8] sm:$0xff]
        %v1190 = vld [vmem:[#allocation14 + $0x1f0] sm:$0xff]
        %v1191 = vld [vmem:[#allocation14 + $0x1f8] sm:$0xff]
        %v1192 = vld [vmem:[%s8] sm:$0xf]
        %1193 = vmatprep.subr.mxu0 0.0
        %1194 = vmatpush1.msra.mxu0 %v1127
        %1195 = vmatprep.subr.mxu0 0.0
        %1196 = vmatpush1.msra.mxu0 %v1126
        %1197 = vmatprep.subr.mxu0 0.0
        %1198 = vmatpush1.msra.mxu0 %v1125
        %1199 = vmatprep.subr.mxu0 0.0
        %1200 = vmatpush1.msra.mxu0 %v1124
        %1201 = vmatprep.subr.mxu0 0.0
        %1202 = vmatpush1.msra.mxu0 %v1123
        %1203 = vmatprep.subr.mxu0 0.0
        %1204 = vmatpush1.msra.mxu0 %v1122
        %1205 = vmatprep.subr.mxu0 0.0
        %1206 = vmatpush1.msra.mxu0 %v1121
        %1207 = vmatprep.subr.mxu0 0.0
        %1208 = vmatpush1.msra.mxu0 %v1120
        %1209 = vmatprep.subr.mxu0 0.0
        %1210 = vmatpush1.msra.mxu0 %v1119
        %1211 = vmatprep.subr.mxu0 0.0
        %1212 = vmatpush1.msra.mxu0 %v1118
        %1213 = vmatprep.subr.mxu0 0.0
        %1214 = vmatpush1.msra.mxu0 %v1117
        %1215 = vmatprep.subr.mxu0 0.0
        %1216 = vmatpush1.msra.mxu0 %v1116
        %1217 = vmatprep.subr.mxu0 0.0
        %1218 = vmatpush1.msra.mxu0 %v1115
        %1219 = vmatprep.subr.mxu0 0.0
        %1220 = vmatpush1.msra.mxu0 %v1114
        %1221 = vmatprep.subr.mxu0 0.0
        %1222 = vmatpush1.msra.mxu0 %v1113
        %1223 = vmatprep.subr.mxu0 0.0
        %1224 = vmatpush1.msra.mxu0 %v1112
        %1225 = vmatprep.subr.mxu0 0.0
        %1226 = vmatpush2.msra.mxu0 0.0
        %1227 = vmatprep.subr.mxu0 0.0
        %1228 = vmatpush2.msra.mxu0 0.0
        %1229 = vmatprep.subr.mxu0 0.0
        %1230 = vmatpush2.msra.mxu0 0.0
        %1231 = vmatprep.subr.mxu0 0.0
        %1232 = vmatpush2.msra.mxu0 0.0
        %1233 = vmatprep.subr.mxu0 0.0
        %1234 = vmatpush2.msra.mxu0 0.0
        %1235 = vmatprep.subr.mxu0 0.0
        %1236 = vmatpush2.msra.mxu0 0.0
        %1237 = vmatprep.subr.mxu0 0.0
        %1238 = vmatpush2.msra.mxu0 0.0
        %1239 = vmatprep.subr.mxu0 0.0
        %1240 = vmatpush2.msra.mxu0 0.0
        %1241 = vmatprep.subr.mxu0 0.0
        %1242 = vmatpush2.msra.mxu0 0.0
        %1243 = vmatprep.subr.mxu0 0.0
        %1244 = vmatpush2.msra.mxu0 0.0
        %1245 = vmatprep.subr.mxu0 0.0
        %1246 = vmatpush2.msra.mxu0 0.0
        %1247 = vmatprep.subr.mxu0 0.0
        %1248 = vmatpush2.msra.mxu0 0.0
        %1249 = vmatprep.subr.mxu0 0.0
        %1250 = vmatpush2.msra.mxu0 0.0
        %1251 = vmatprep.subr.mxu0 0.0
        %1252 = vmatpush2.msra.mxu0 0.0
        %1253 = vmatprep.subr.mxu0 0.0
        %1254 = vmatpush2.msra.mxu0 0.0
        %1255 = vmatprep.subr.mxu0 0.0
        %1256 = vmatpush2.msra.mxu0 0.0
        %1257 = vmatprep.mubr.f32.mxu0 0.0
        %1258 = vmatmul.mubr.f32.gmra.mxu0 %v1111
        %v1259 = vpop.f32.mrf.mxu0
        %v1260 = vadd.f32 0.0, %v1259
        %v1261 = vpop.f32.mrf.mxu0
        %1262 = vdwg.mxu0
        %v1263 = vsel %vm745, %v1260, -inf
        %1264 = vmax.xlane.f32.xlu0 %v1263
        %v1265 = vpop.xlane.xlu0 %1264
        %v1266 = vsub.f32 %v1263, %v1265
        %v1267 = vmul.f32 %v1266, 1.442695
        %v1268 = vpow.pop %v1267
        %1269 = vadd.xlane.f32.xlu0 %v1268
        %v1270 = vpop.xlane.xlu0 %1269
        %v1271 = vrcp.pop %v1270
        %v1272 = vmul.f32 %v1268, %v1271
        %vm1273 = vcmp.ge.f32.partialorder %v1263, %v1265
        %v1274 = vsel %vm1273, %v744, 4
        %v1275 = vand.u32 %v1274, 65535
        %v1276 = vshra.s32 %v1274, 16
        %v1277 = vcvt.s32.f32 %v1275
        %v1278 = vcvt.s32.f32 %v1276
        %1279 = vmin.xlane.f32.xlu0 %v1278
        %v1280 = vpop.xlane.xlu0 %1279
        %vm1281 = vcmp.eq.f32.partialorder %v1278, %v1280
        %v1282 = vsel %vm1281, %v1277, inf
        %1283 = vmin.xlane.f32.xlu0 %v1282
        %v1284 = vpop.xlane.xlu0 %1283
        %v1285 = vcvt.f32.s32 %v1284
        %v1286 = vcvt.f32.s32 %v1280
        %v1287 = vshll.u32 %v1286, 16
        %v1288 = vadd.s32 %v1287, %v1285
        %vm1289 = vcmp.eq.s32.totalorder %v1288, 0
        %v1290 = vsel %vm1289, 1, 0
        %v1291 = vcvt.s32.f32 %v1290
        %v1292 = vmul.f32 %v1291, %v1272
        %v1293 = vlaneseq
        %v1294 = vshrl.u32 %v1293, 7
        %v1295 = vsub.s32 0, %v1294
        %v1296 = vrot.slane %v1192, %v1295
        %1297 = vmatprep.subr.mxu0 0.0
        %1298 = vmatpush1.msra.mxu0 %v1143
        %1299 = vmatprep.subr.mxu0 0.0
        %1300 = vmatpush1.msra.mxu0 %v1142
        %1301 = vmatprep.subr.mxu0 0.0
        %1302 = vmatpush1.msra.mxu0 %v1141
        %1303 = vmatprep.subr.mxu0 0.0
        %1304 = vmatpush1.msra.mxu0 %v1140
        %1305 = vmatprep.subr.mxu0 0.0
        %1306 = vmatpush1.msra.mxu0 %v1139
        %1307 = vmatprep.subr.mxu0 0.0
        %1308 = vmatpush1.msra.mxu0 %v1138
        %1309 = vmatprep.subr.mxu0 0.0
        %1310 = vmatpush1.msra.mxu0 %v1137
        %1311 = vmatprep.subr.mxu0 0.0
        %1312 = vmatpush1.msra.mxu0 %v1136
        %1313 = vmatprep.subr.mxu0 0.0
        %1314 = vmatpush1.msra.mxu0 %v1135
        %1315 = vmatprep.subr.mxu0 0.0
        %1316 = vmatpush1.msra.mxu0 %v1134
        %1317 = vmatprep.subr.mxu0 0.0
        %1318 = vmatpush1.msra.mxu0 %v1133
        %1319 = vmatprep.subr.mxu0 0.0
        %1320 = vmatpush1.msra.mxu0 %v1132
        %1321 = vmatprep.subr.mxu0 0.0
        %1322 = vmatpush1.msra.mxu0 %v1131
        %1323 = vmatprep.subr.mxu0 0.0
        %1324 = vmatpush1.msra.mxu0 %v1130
        %1325 = vmatprep.subr.mxu0 0.0
        %1326 = vmatpush1.msra.mxu0 %v1129
        %1327 = vmatprep.subr.mxu0 0.0
        %1328 = vmatpush1.msra.mxu0 %v1128
        %1329 = vmatprep.subr.mxu0 0.0
        %1330 = vmatpush2.msra.mxu0 0.0
        %1331 = vmatprep.subr.mxu0 0.0
        %1332 = vmatpush2.msra.mxu0 0.0
        %1333 = vmatprep.subr.mxu0 0.0
        %1334 = vmatpush2.msra.mxu0 0.0
        %1335 = vmatprep.subr.mxu0 0.0
        %1336 = vmatpush2.msra.mxu0 0.0
        %1337 = vmatprep.subr.mxu0 0.0
        %1338 = vmatpush2.msra.mxu0 0.0
        %1339 = vmatprep.subr.mxu0 0.0
        %1340 = vmatpush2.msra.mxu0 0.0
        %1341 = vmatprep.subr.mxu0 0.0
        %1342 = vmatpush2.msra.mxu0 0.0
        %1343 = vmatprep.subr.mxu0 0.0
        %1344 = vmatpush2.msra.mxu0 0.0
        %1345 = vmatprep.subr.mxu0 0.0
        %1346 = vmatpush2.msra.mxu0 0.0
        %1347 = vmatprep.subr.mxu0 0.0
        %1348 = vmatpush2.msra.mxu0 0.0
        %1349 = vmatprep.subr.mxu0 0.0
        %1350 = vmatpush2.msra.mxu0 0.0
        %1351 = vmatprep.subr.mxu0 0.0
        %1352 = vmatpush2.msra.mxu0 0.0
        %1353 = vmatprep.subr.mxu0 0.0
        %1354 = vmatpush2.msra.mxu0 0.0
        %1355 = vmatprep.subr.mxu0 0.0
        %1356 = vmatpush2.msra.mxu0 0.0
        %1357 = vmatprep.subr.mxu0 0.0
        %1358 = vmatpush2.msra.mxu0 0.0
        %1359 = vmatprep.subr.mxu0 0.0
        %1360 = vmatpush2.msra.mxu0 0.0
        %1361 = vmatprep.mubr.f32.mxu0 0.0
        %1362 = vmatmul.mubr.f32.gmra.mxu0 %v1111
        %v1363 = vpop.f32.mrf.mxu0
        %v1364 = vadd.f32 %v1296, %v1363
        %v1365 = vpop.f32.mrf.mxu0
        %1366 = vdwg.mxu0
        %1368 = vset.pattern.permute.xlu0 0
        %1369 = vperm.xlu0 %1368, %v1292
        %v1370 = vpop.permute.xlu0 %1369
        %v1372 = vmul.f32 %v1370, %v1364
        %v1373 = vadd.f32 %v1372, 0.0
        %vm1374 = vcmp.eq.s32.totalorder %v1288, 1
        %v1375 = vsel %vm1374, 1, 0
        %v1376 = vcvt.s32.f32 %v1375
        %v1377 = vmul.f32 %v1376, %v1272
        %v1378 = vlaneseq
        %v1379 = vshrl.u32 %v1378, 7
        %v1380 = vsub.s32 1, %v1379
        %v1381 = vrot.slane %v1192, %v1380
        %1382 = vmatprep.subr.mxu0 0.0
        %1383 = vmatpush1.msra.mxu0 %v1159
        %1384 = vmatprep.subr.mxu0 0.0
        %1385 = vmatpush1.msra.mxu0 %v1158
        %1386 = vmatprep.subr.mxu0 0.0
        %1387 = vmatpush1.msra.mxu0 %v1157
        %1388 = vmatprep.subr.mxu0 0.0
        %1389 = vmatpush1.msra.mxu0 %v1156
        %1390 = vmatprep.subr.mxu0 0.0
        %1391 = vmatpush1.msra.mxu0 %v1155
        %1392 = vmatprep.subr.mxu0 0.0
        %1393 = vmatpush1.msra.mxu0 %v1154
        %1394 = vmatprep.subr.mxu0 0.0
        %1395 = vmatpush1.msra.mxu0 %v1153
        %1396 = vmatprep.subr.mxu0 0.0
        %1397 = vmatpush1.msra.mxu0 %v1152
        %1398 = vmatprep.subr.mxu0 0.0
        %1399 = vmatpush1.msra.mxu0 %v1151
        %1400 = vmatprep.subr.mxu0 0.0
        %1401 = vmatpush1.msra.mxu0 %v1150
        %1402 = vmatprep.subr.mxu0 0.0
        %1403 = vmatpush1.msra.mxu0 %v1149
        %1404 = vmatprep.subr.mxu0 0.0
        %1405 = vmatpush1.msra.mxu0 %v1148
        %1406 = vmatprep.subr.mxu0 0.0
        %1407 = vmatpush1.msra.mxu0 %v1147
        %1408 = vmatprep.subr.mxu0 0.0
        %1409 = vmatpush1.msra.mxu0 %v1146
        %1410 = vmatprep.subr.mxu0 0.0
        %1411 = vmatpush1.msra.mxu0 %v1145
        %1412 = vmatprep.subr.mxu0 0.0
        %1413 = vmatpush1.msra.mxu0 %v1144
        %1414 = vmatprep.subr.mxu0 0.0
        %1415 = vmatpush2.msra.mxu0 0.0
        %1416 = vmatprep.subr.mxu0 0.0
        %1417 = vmatpush2.msra.mxu0 0.0
        %1418 = vmatprep.subr.mxu0 0.0
        %1419 = vmatpush2.msra.mxu0 0.0
        %1420 = vmatprep.subr.mxu0 0.0
        %1421 = vmatpush2.msra.mxu0 0.0
        %1422 = vmatprep.subr.mxu0 0.0
        %1423 = vmatpush2.msra.mxu0 0.0
        %1424 = vmatprep.subr.mxu0 0.0
        %1425 = vmatpush2.msra.mxu0 0.0
        %1426 = vmatprep.subr.mxu0 0.0
        %1427 = vmatpush2.msra.mxu0 0.0
        %1428 = vmatprep.subr.mxu0 0.0
        %1429 = vmatpush2.msra.mxu0 0.0
        %1430 = vmatprep.subr.mxu0 0.0
        %1431 = vmatpush2.msra.mxu0 0.0
        %1432 = vmatprep.subr.mxu0 0.0
        %1433 = vmatpush2.msra.mxu0 0.0
        %1434 = vmatprep.subr.mxu0 0.0
        %1435 = vmatpush2.msra.mxu0 0.0
        %1436 = vmatprep.subr.mxu0 0.0
        %1437 = vmatpush2.msra.mxu0 0.0
        %1438 = vmatprep.subr.mxu0 0.0
        %1439 = vmatpush2.msra.mxu0 0.0
        %1440 = vmatprep.subr.mxu0 0.0
        %1441 = vmatpush2.msra.mxu0 0.0
        %1442 = vmatprep.subr.mxu0 0.0
        %1443 = vmatpush2.msra.mxu0 0.0
        %1444 = vmatprep.subr.mxu0 0.0
        %1445 = vmatpush2.msra.mxu0 0.0
        %1446 = vmatprep.mubr.f32.mxu0 0.0
        %1447 = vmatmul.mubr.f32.gmra.mxu0 %v1111
        %v1448 = vpop.f32.mrf.mxu0
        %v1449 = vadd.f32 %v1381, %v1448
        %v1450 = vpop.f32.mrf.mxu0
        %1451 = vdwg.mxu0
        %1453 = vset.pattern.permute.xlu0 1
        %1454 = vperm.xlu0 %1453, %v1377
        %v1455 = vpop.permute.xlu0 %1454
        %v1457 = vmul.f32 %v1455, %v1449
        %v1458 = vadd.f32 %v1373, %v1457
        %vm1459 = vcmp.eq.s32.totalorder %v1288, 2
        %v1460 = vsel %vm1459, 1, 0
        %v1461 = vcvt.s32.f32 %v1460
        %v1462 = vmul.f32 %v1461, %v1272
        %v1463 = vlaneseq
        %v1464 = vshrl.u32 %v1463, 7
        %v1465 = vsub.s32 2, %v1464
        %v1466 = vrot.slane %v1192, %v1465
        %1467 = vmatprep.subr.mxu0 0.0
        %1468 = vmatpush1.msra.mxu0 %v1175
        %1469 = vmatprep.subr.mxu0 0.0
        %1470 = vmatpush1.msra.mxu0 %v1174
        %1471 = vmatprep.subr.mxu0 0.0
        %1472 = vmatpush1.msra.mxu0 %v1173
        %1473 = vmatprep.subr.mxu0 0.0
        %1474 = vmatpush1.msra.mxu0 %v1172
        %1475 = vmatprep.subr.mxu0 0.0
        %1476 = vmatpush1.msra.mxu0 %v1171
        %1477 = vmatprep.subr.mxu0 0.0
        %1478 = vmatpush1.msra.mxu0 %v1170
        %1479 = vmatprep.subr.mxu0 0.0
        %1480 = vmatpush1.msra.mxu0 %v1169
        %1481 = vmatprep.subr.mxu0 0.0
        %1482 = vmatpush1.msra.mxu0 %v1168
        %1483 = vmatprep.subr.mxu0 0.0
        %1484 = vmatpush1.msra.mxu0 %v1167
        %1485 = vmatprep.subr.mxu0 0.0
        %1486 = vmatpush1.msra.mxu0 %v1166
        %1487 = vmatprep.subr.mxu0 0.0
        %1488 = vmatpush1.msra.mxu0 %v1165
        %1489 = vmatprep.subr.mxu0 0.0
        %1490 = vmatpush1.msra.mxu0 %v1164
        %1491 = vmatprep.subr.mxu0 0.0
        %1492 = vmatpush1.msra.mxu0 %v1163
        %1493 = vmatprep.subr.mxu0 0.0
        %1494 = vmatpush1.msra.mxu0 %v1162
        %1495 = vmatprep.subr.mxu0 0.0
        %1496 = vmatpush1.msra.mxu0 %v1161
        %1497 = vmatprep.subr.mxu0 0.0
        %1498 = vmatpush1.msra.mxu0 %v1160
        %1499 = vmatprep.subr.mxu0 0.0
        %1500 = vmatpush2.msra.mxu0 0.0
        %1501 = vmatprep.subr.mxu0 0.0
        %1502 = vmatpush2.msra.mxu0 0.0
        %1503 = vmatprep.subr.mxu0 0.0
        %1504 = vmatpush2.msra.mxu0 0.0
        %1505 = vmatprep.subr.mxu0 0.0
        %1506 = vmatpush2.msra.mxu0 0.0
        %1507 = vmatprep.subr.mxu0 0.0
        %1508 = vmatpush2.msra.mxu0 0.0
        %1509 = vmatprep.subr.mxu0 0.0
        %1510 = vmatpush2.msra.mxu0 0.0
        %1511 = vmatprep.subr.mxu0 0.0
        %1512 = vmatpush2.msra.mxu0 0.0
        %1513 = vmatprep.subr.mxu0 0.0
        %1514 = vmatpush2.msra.mxu0 0.0
        %1515 = vmatprep.subr.mxu0 0.0
        %1516 = vmatpush2.msra.mxu0 0.0
        %1517 = vmatprep.subr.mxu0 0.0
        %1518 = vmatpush2.msra.mxu0 0.0
        %1519 = vmatprep.subr.mxu0 0.0
        %1520 = vmatpush2.msra.mxu0 0.0
        %1521 = vmatprep.subr.mxu0 0.0
        %1522 = vmatpush2.msra.mxu0 0.0
        %1523 = vmatprep.subr.mxu0 0.0
        %1524 = vmatpush2.msra.mxu0 0.0
        %1525 = vmatprep.subr.mxu0 0.0
        %1526 = vmatpush2.msra.mxu0 0.0
        %1527 = vmatprep.subr.mxu0 0.0
        %1528 = vmatpush2.msra.mxu0 0.0
        %1529 = vmatprep.subr.mxu0 0.0
        %1530 = vmatpush2.msra.mxu0 0.0
        %1531 = vmatprep.mubr.f32.mxu0 0.0
        %1532 = vmatmul.mubr.f32.gmra.mxu0 %v1111
        %v1533 = vpop.f32.mrf.mxu0
        %v1534 = vadd.f32 %v1466, %v1533
        %v1535 = vpop.f32.mrf.mxu0
        %1536 = vdwg.mxu0
        %1538 = vset.pattern.permute.xlu0 2
        %1539 = vperm.xlu0 %1538, %v1462
        %v1540 = vpop.permute.xlu0 %1539
        %v1542 = vmul.f32 %v1540, %v1534
        %v1543 = vadd.f32 %v1458, %v1542
        %vm1544 = vcmp.eq.s32.totalorder %v1288, 3
        %v1545 = vsel %vm1544, 1, 0
        %v1546 = vcvt.s32.f32 %v1545
        %v1547 = vmul.f32 %v1546, %v1272
        %v1548 = vlaneseq
        %v1549 = vshrl.u32 %v1548, 7
        %v1550 = vsub.s32 3, %v1549
        %v1551 = vrot.slane %v1192, %v1550
        %1552 = vmatprep.subr.mxu0 0.0
        %1553 = vmatpush1.msra.mxu0 %v1191
        %1554 = vmatprep.subr.mxu0 0.0
        %1555 = vmatpush1.msra.mxu0 %v1190
        %1556 = vmatprep.subr.mxu0 0.0
        %1557 = vmatpush1.msra.mxu0 %v1189
        %1558 = vmatprep.subr.mxu0 0.0
        %1559 = vmatpush1.msra.mxu0 %v1188
        %1560 = vmatprep.subr.mxu0 0.0
        %1561 = vmatpush1.msra.mxu0 %v1187
        %1562 = vmatprep.subr.mxu0 0.0
        %1563 = vmatpush1.msra.mxu0 %v1186
        %1564 = vmatprep.subr.mxu0 0.0
        %1565 = vmatpush1.msra.mxu0 %v1185
        %1566 = vmatprep.subr.mxu0 0.0
        %1567 = vmatpush1.msra.mxu0 %v1184
        %1568 = vmatprep.subr.mxu0 0.0
        %1569 = vmatpush1.msra.mxu0 %v1183
        %1570 = vmatprep.subr.mxu0 0.0
        %1571 = vmatpush1.msra.mxu0 %v1182
        %1572 = vmatprep.subr.mxu0 0.0
        %1573 = vmatpush1.msra.mxu0 %v1181
        %1574 = vmatprep.subr.mxu0 0.0
        %1575 = vmatpush1.msra.mxu0 %v1180
        %1576 = vmatprep.subr.mxu0 0.0
        %1577 = vmatpush1.msra.mxu0 %v1179
        %1578 = vmatprep.subr.mxu0 0.0
        %1579 = vmatpush1.msra.mxu0 %v1178
        %1580 = vmatprep.subr.mxu0 0.0
        %1581 = vmatpush1.msra.mxu0 %v1177
        %1582 = vmatprep.subr.mxu0 0.0
        %1583 = vmatpush1.msra.mxu0 %v1176
        %1584 = vmatprep.subr.mxu0 0.0
        %1585 = vmatpush2.msra.mxu0 0.0
        %1586 = vmatprep.subr.mxu0 0.0
        %1587 = vmatpush2.msra.mxu0 0.0
        %1588 = vmatprep.subr.mxu0 0.0
        %1589 = vmatpush2.msra.mxu0 0.0
        %1590 = vmatprep.subr.mxu0 0.0
        %1591 = vmatpush2.msra.mxu0 0.0
        %1592 = vmatprep.subr.mxu0 0.0
        %1593 = vmatpush2.msra.mxu0 0.0
        %1594 = vmatprep.subr.mxu0 0.0
        %1595 = vmatpush2.msra.mxu0 0.0
        %1596 = vmatprep.subr.mxu0 0.0
        %1597 = vmatpush2.msra.mxu0 0.0
        %1598 = vmatprep.subr.mxu0 0.0
        %1599 = vmatpush2.msra.mxu0 0.0
        %1600 = vmatprep.subr.mxu0 0.0
        %1601 = vmatpush2.msra.mxu0 0.0
        %1602 = vmatprep.subr.mxu0 0.0
        %1603 = vmatpush2.msra.mxu0 0.0
        %1604 = vmatprep.subr.mxu0 0.0
        %1605 = vmatpush2.msra.mxu0 0.0
        %1606 = vmatprep.subr.mxu0 0.0
        %1607 = vmatpush2.msra.mxu0 0.0
        %1608 = vmatprep.subr.mxu0 0.0
        %1609 = vmatpush2.msra.mxu0 0.0
        %1610 = vmatprep.subr.mxu0 0.0
        %1611 = vmatpush2.msra.mxu0 0.0
        %1612 = vmatprep.subr.mxu0 0.0
        %1613 = vmatpush2.msra.mxu0 0.0
        %1614 = vmatprep.subr.mxu0 0.0
        %1615 = vmatpush2.msra.mxu0 0.0
        %1616 = vmatprep.mubr.f32.mxu0 0.0
        %1617 = vmatmul.mubr.f32.gmra.mxu0 %v1111
        %v1618 = vpop.f32.mrf.mxu0
        %v1619 = vadd.f32 %v1551, %v1618
        %v1620 = vpop.f32.mrf.mxu0
        %1621 = vdwg.mxu0
        %1623 = vset.pattern.permute.xlu0 3
        %1624 = vperm.xlu0 %1623, %v1547
        %v1625 = vpop.permute.xlu0 %1624
        %v1627 = vmul.f32 %v1625, %v1619
        %v1628 = vadd.f32 %v1543, %v1627
        %v1629 = vadd.f32 %v589, %v1628
        %v1630 = vld [vmem:[#allocation2] sm:$0x1]
        %v1631 = vrot.slane %v1629, 4
        %v1632 = vadd.f32 %v1629, %v1631
        %v1633 = vrot.slane %v1632, 2
        %v1634 = vadd.f32 %v1632, %v1633
        %v1635 = vrot.slane %v1634, 1
        %v1636 = vadd.f32 %v1634, %v1635
        %v1637 = vadd.f32 %v1630, %v1636
        %1638 = vst [vmem:[#allocation2] sm:$0x1] %v1637
        %p1639 = scmp.eq.s32.totalorder %s35, 1
        // Predicated region
        $region93: #{tpu_custom_call.1} parent=59 // pred_check
          %p1640 = pneg %p1639
        $region94: #{tpu_custom_call.1} parent=59 // pred_check_branch
          %1642 = sbr.rel (%p1640) target = $region96
        $region95: #{tpu_custom_call.1} parent=59 // pred_region
          %v1643 = vld [vmem:[#allocation2] sm:$0x1]
          %v1644 = vmul.f32 %v1643, 0.0625
          %vm1645 = vcmp.lt.s32.totalorder %v744, 8
          %v1646 = vsel %vm1645, %v1644, -inf
          %vm1647 = vcmask 1040384
          %v1648 = vsel %vm1647, %v1646, -inf
          %1649 = vmax.xlane.f32.xlu0 %v1648
          %v1650 = vpop.xlane.xlu0 %1649
          %v1651 = vsub.f32 %v1646, %v1650
          %v1652 = vmul.f32 %v1651, 1.442695
          %v1653 = vpow.pop %v1652
          %v1654 = vsel %vm1647, %v1653, 0.0
          %1655 = vadd.xlane.f32.xlu0 %v1654
          %v1656 = vpop.xlane.xlu0 %1655
          %v1657 = vlog2.pop %v1656
          %v1658 = vmul.f32 %v1657, 0.6931472
          %v1659 = vadd.f32 %v1650, %v1658
          %v1660 = vld [vmem:[%s492] sm:$0x1]
          %v1661 = vmul.f32 %v1660, %v1644
          %v1662 = vsel %vm1647, %v1661, 0.0
          %1663 = vadd.xlane.f32.xlu0 %v1662
          %v1664 = vpop.xlane.xlu0 %1663
          %v1665 = vsub.f32 %v1659, %v1664
          %1666 = vst [vmem:[%s487] sm:$0x1] %v1665
        $region96: #{tpu_custom_call.1} parent=59 // pred_fallthru
          _
        %s1667 = sand.u32 %s274, 1
        %s1668 = scalar_lea.sflag [#allocation5], %s1667
        %s1669 = sand.u32 %s274, 1
        %s1670 = scalar_lea.vmem [#allocation15], %s1669
        // Predicated region
        $region97: #{tpu_custom_call.1} parent=59 // pred_check
          %p1671 = pneg %p284
        $region98: #{tpu_custom_call.1} parent=59 // pred_check_branch
          %1673 = sbr.rel (%p1671) target = $region100
        $region99: #{tpu_custom_call.1} parent=59 // pred_region
          %s1675 = ssub.s32 16, 16
          %1676 = vsyncadd %s1668, %s1675
          %s1677 = smul.addr %s34, 16
          %s1678 = scalar_lea.hbm %s10, %s1677
          %s1680 = sshll.u32 %s1670, 4
          %s1681 = int_to_ptr.vmem [resolvable:$true] %s1680
          %1683 = dma.vmem_to_hbm [thread:$0]  %s1681, 16, %s1678, %s1668
        $region100: #{tpu_custom_call.1} parent=59 // pred_fallthru
          _
      $region60: #{tpu_custom_call.1} parent=5 // pred_fallthru
        _
      %p1684 = scmp.le.s32.totalorder 2, %s25
      // Predicated region
      $region101: #{tpu_custom_call.1} parent=5 // pred_check
        %p1685 = pneg %p1684
      $region102: #{tpu_custom_call.1} parent=5 // pred_check_branch
        %1687 = sbr.rel (%p1685) target = $region104
      $region103: #{tpu_custom_call.1} parent=5 // pred_region
        %s1688 = ssub.s32 %s25, 2
        // Predicated region
        $region105: #{tpu_custom_call.1} parent=103 // pred_check
          %p1689 = pneg %p290
        $region106: #{tpu_custom_call.1} parent=103 // pred_check_branch
          %1691 = sbr.rel (%p1689) target = $region108
        $region107: #{tpu_custom_call.1} parent=103 // pred_region
          %s1692 = sand.u32 %s275, 1
          %s1693 = scalar_lea.sflag [#allocation5], %s1692
          %s1694 = sand.u32 %s275, 1
          %s1695 = scalar_lea.vmem [#allocation15], %s1694
          %1696 = dma.done %s1693, 16
        $region108: #{tpu_custom_call.1} parent=103 // pred_fallthru
          _
      $region104: #{tpu_custom_call.1} parent=5 // pred_fallthru
        _
    $region6: #{tpu_custom_call.1} parent=1 // loop_footer
      %s29 = sadd.s32 1, %s25
    $region7: #{tpu_custom_call.1} parent=1 // loop_footer_branch
      %24 = sbr.rel target = $region3
    $region8: #{tpu_custom_call.1} parent=1 // loop_exit
      _
    %1697 = vsyncpa [#allocation4], 1
    %s1698 = scalar_lea.sflag [#allocation4], 1
    %1699 = vsyncpa %s1698, 1
    %1700 = vsyncpa [#allocation7], 1
    %1701 = vsyncpa [#allocation10], 1
    %1702 = vsyncpa [#allocation13], 1
    %1703 = vsyncpa [#allocation5], 1
    %s1704 = scalar_lea.sflag [#allocation5], 1
    %1705 = vsyncpa %s1704, 1

</llo_original>
